<compile_context>
chip_gen: v7x
topology: tpu7x:2x2x1
jax: 0.10.0
libtpu: 0.0.40
codegen_flags: <defaults>
</compile_context>

<pallas_src>
import jax
import jax.numpy as jnp
from jax.experimental import pallas as pl
from jax.experimental.pallas import tpu as pltpu


# ----------------------------------------------------------------------------
# Pallas kernel: hoisted input projections + fused fwd/bwd recurrence.
# ----------------------------------------------------------------------------
def _bilstm_kernel(emb_ref,     # [T*B, H]    bf16  time-major flattened embeddings
                   mask_ref,    # [T*B, 1]    f32   1.0 where t < len[b] else 0.0
                   wif_ref,     # [H, 4*Hh]   bf16  fwd W_ih (transposed, i/f/o cols pre-scaled 0.5)
                   wib_ref,     # [H, 4*Hh]   bf16  bwd W_ih
                   whf_ref,     # [Hh, 4*Hh]  bf16  fwd W_hh (transposed, scaled)
                   whb_ref,     # [Hh, 4*Hh]  bf16  bwd W_hh
                   bf_ref,      # [1, 4*Hh]   f32   fwd b_ih+b_hh (scaled)
                   bb_ref,      # [1, 4*Hh]   f32   bwd b_ih+b_hh (scaled)
                   out_ref,     # [T*B, H]    f32   enc_output, time-major flattened
                   h_ref,       # [1, B, H]   f32   merged fwd||bwd h_n
                   c_ref,       # [1, B, H]   f32   merged fwd||bwd c_n
                   ginf_ref,    # scratch [T*B, 4*Hh] f32  fwd input-gate pre-activations
                   ginb_ref):   # scratch [T*B, 4*Hh] f32  bwd input-gate pre-activations
    TB, H = emb_ref.shape
    B = h_ref.shape[1]
    T = TB // B
    Hh = H // 2
    Gd = 4 * Hh                      # per-direction gate width (i, f, g, o)

    # ---- hoisted input projections: one MXU matmul per direction, all steps.
    emb = emb_ref[...]
    ginf_ref[...] = (jnp.dot(emb, wif_ref[...], preferred_element_type=jnp.float32)
                     + bf_ref[...])
    ginb_ref[...] = (jnp.dot(emb, wib_ref[...], preferred_element_type=jnp.float32)
                     + bb_ref[...])

    whf = whf_ref[...]
    whb = whb_ref[...]

    # Hoisted activation correction: g-gate lanes keep tanh, the (pre-scaled)
    # i/f/o lanes become sigmoid via 0.5*tanh + 0.5.  act = y*scale + bias.
    lane = jax.lax.broadcasted_iota(jnp.int32, (B, Gd), 1)
    g_lane = (lane >= 2 * Hh) & (lane < 3 * Hh)
    act_scale = jnp.where(g_lane, 1.0, 0.5).astype(jnp.float32)
    act_bias = jnp.where(g_lane, 0.0, 0.5).astype(jnp.float32)

    zeros = jnp.zeros((B, Hh), jnp.float32)

    def cell(gin_row, h, c, whh):
        # One recurrent matmul (bf16 operands, f32 accumulate) + one tanh pass.
        pre = (jnp.dot(h.astype(jnp.bfloat16), whh,
                       preferred_element_type=jnp.float32) + gin_row)
        y = jnp.tanh(pre)                              # single EUP pass per tile
        act = y * act_scale + act_bias                 # exact sigmoid on i,f,o
        c_new = act[:, Hh:2 * Hh] * c + act[:, 0:Hh] * act[:, 2 * Hh:3 * Hh]
        h_new = act[:, 3 * Hh:4 * Hh] * jnp.tanh(c_new)
        return h_new, c_new

    def body(s, carry):
        h_f, c_f, h_b, c_b = carry
        # B is padded to a multiple of 8 by the wrapper -> aligned sublane rows.
        row_f = pl.multiple_of(s * B, 8)               # forward time index  s
        row_b = pl.multiple_of((T - 1 - s) * B, 8)     # backward time index T-1-s

        h_f_new, c_f_new = cell(ginf_ref[pl.ds(row_f, B), :], h_f, c_f, whf)
        h_b_new, c_b_new = cell(ginb_ref[pl.ds(row_b, B), :], h_b, c_b, whb)

        # pack/pad_packed emulation: zero padded outputs, freeze carries.
        m_f = mask_ref[pl.ds(row_f, B)] > 0.0          # [B, 1] bool
        m_b = mask_ref[pl.ds(row_b, B)] > 0.0

        out_ref[pl.ds(row_f, B), 0:Hh] = jnp.where(m_f, h_f_new, 0.0)
        out_ref[pl.ds(row_b, B), Hh:H] = jnp.where(m_b, h_b_new, 0.0)

        h_f = jnp.where(m_f, h_f_new, h_f)
        c_f = jnp.where(m_f, c_f_new, c_f)
        h_b = jnp.where(m_b, h_b_new, h_b)
        c_b = jnp.where(m_b, c_b_new, c_b)
        return h_f, c_f, h_b, c_b

    # Fused fwd+bwd recurrence; bounded unroll keeps vreg pressure in check.
    h_f, c_f, h_b, c_b = jax.lax.fori_loop(
        0, T, body, (zeros, zeros, zeros, zeros), unroll=min(T, 8))

    # merged final states, matching Encoder._reshape_hidden:
    #   cat([h_fwd, h_bwd], dim=2) -> [num_layers=1, B, H]
    h_ref[0, :, 0:Hh] = h_f
    h_ref[0, :, Hh:H] = h_b
    c_ref[0, :, 0:Hh] = c_f
    c_ref[0, :, Hh:H] = c_b


# ----------------------------------------------------------------------------
# Wrapper
# ----------------------------------------------------------------------------
@jax.jit
def encoder_forward(src, lengths, params):
    """src: [B, T] int32 tokens; lengths: [B] int32.

    Returns (enc_output [B, T, H], (h [1, B, H], c [1, B, H])).
    """
    emb_table = params["embedding"]                     # [V, H]
    B, T = src.shape
    H = emb_table.shape[1]
    Hh = H // 2

    # Pad batch to the sublane granule (8).  Padded rows get length 0, so the
    # in-kernel mask zeroes their outputs and keeps their carries at zero.
    Bp = ((B + 7) // 8) * 8
    pad_b = Bp - B
    src_p = jnp.pad(src, ((0, pad_b), (0, 0)), constant_values=0)
    len_p = jnp.pad(lengths.astype(jnp.int32), ((0, pad_b),), constant_values=0)

    # Embedding gather directly in time-major order (transpose the small int32
    # id matrix, not f32 activations); bf16 for the MXU.  Padding row is zero.
    # TODO(synk): at scale, gather rows inside the kernel (PrefetchScalarGridSpec
    #             + pl.Element index_map) to avoid this extra HBM pass.
    ids_tm = jnp.transpose(src_p).reshape(T * Bp)
    emb_flat = jnp.take(emb_table, ids_tm, axis=0).astype(jnp.bfloat16)  # [T*Bp, H]
    # TODO(synk): dropout is training-only in the reference module; eval mode here.

    # Validity mask emulating pack/pad_packed (time-major, flattened).
    t_idx = jnp.arange(T, dtype=jnp.int32)[:, None]                      # [T, 1]
    mask_flat = ((t_idx < len_p[None, :])
                 .astype(jnp.float32).reshape(T * Bp, 1))                # [T*Bp, 1]

    # Fold the 0.5 pre-scale of the sigmoid gates (i, f, o columns) into the
    # weights/biases so the kernel needs only one tanh per gate tile; cast the
    # matmul operands to bf16 (f32 accumulation in-kernel).
    col = jnp.arange(4 * Hh)
    scale = jnp.where((col >= 2 * Hh) & (col < 3 * Hh), 1.0, 0.5)[None, :]
    wif = (params["wih_f"] * scale).astype(jnp.bfloat16)                 # [H,  4*Hh]
    wib = (params["wih_b"] * scale).astype(jnp.bfloat16)
    whf = (params["whh_f"] * scale).astype(jnp.bfloat16)                 # [Hh, 4*Hh]
    whb = (params["whh_b"] * scale).astype(jnp.bfloat16)
    bf = (params["b_f"] * scale).astype(jnp.float32)                     # [1,  4*Hh]
    bb = (params["b_b"] * scale).astype(jnp.float32)

    vmem = pl.BlockSpec(memory_space=pltpu.MemorySpace.VMEM)
    out_flat, h_n, c_n = pl.pallas_call(
        _bilstm_kernel,
        out_shape=(
            jax.ShapeDtypeStruct((T * Bp, H), jnp.float32),
            jax.ShapeDtypeStruct((1, Bp, H), jnp.float32),
            jax.ShapeDtypeStruct((1, Bp, H), jnp.float32),
        ),
        in_specs=[vmem] * 8,
        out_specs=(vmem, vmem, vmem),
        scratch_shapes=[pltpu.VMEM((T * Bp, 4 * Hh), jnp.float32),
                        pltpu.VMEM((T * Bp, 4 * Hh), jnp.float32)],
    )(emb_flat, mask_flat, wif, wib, whf, whb, bf, bb)

    # TODO(synk): at scale emit [B, T, H] directly via a gridded out_spec to
    #             avoid this extra HBM transpose pass.
    enc_output = jnp.transpose(out_flat.reshape(T, Bp, H), (1, 0, 2))[:B]   # [B, T, H]
    return enc_output, (h_n[:, :B], c_n[:, :B])


# ----------------------------------------------------------------------------
# Deterministic parameter init (shapes follow nn.Embedding / nn.LSTM)
# ----------------------------------------------------------------------------
def init_params(key, src_vocab_size, hidden_size, padding_idx):
    H = hidden_size
    Hh = H // 2
    keys = jax.random.split(key, 9)

    emb = jax.random.normal(keys[0], (src_vocab_size, H), jnp.float32)
    emb = emb.at[padding_idx].set(0.0)                 # padding_idx row is zero

    bound = 1.0 / jnp.sqrt(jnp.float32(Hh))
    u = lambda k, shape: jax.random.uniform(k, shape, jnp.float32, -bound, bound)

    # torch weight_ih: [4*Hh, H]; stored transposed [H, 4*Hh] for x @ W
    return {
        "embedding": emb,
        "wih_f": u(keys[1], (H, 4 * Hh)),
        "whh_f": u(keys[2], (Hh, 4 * Hh)),
        "b_f":   u(keys[3], (1, 4 * Hh)) + u(keys[4], (1, 4 * Hh)),   # b_ih + b_hh
        "wih_b": u(keys[5], (H, 4 * Hh)),
        "whh_b": u(keys[6], (Hh, 4 * Hh)),
        "b_b":   u(keys[7], (1, 4 * Hh)) + u(keys[8], (1, 4 * Hh)),
    }


# ----------------------------------------------------------------------------
if __name__ == "__main__":
    src_vocab_size = 50
    hidden_size = 32          # H ; per-direction LSTM hidden = 16
    padding_idx = 0
    dropout = 0.3             # unused (eval mode)
    B, T = 2, 8

    key = jax.random.PRNGKey(0)
    k_params, k_src = jax.random.split(key)
    params = init_params(k_params, src_vocab_size, hidden_size, padding_idx)

    lengths = jnp.array([8, 5], dtype=jnp.int32)
    src = jax.random.randint(k_src, (B, T), 1, src_vocab_size, dtype=jnp.int32)
    # pad positions beyond the sequence length with padding_idx
    t_idx = jnp.arange(T)[None, :]
    src = jnp.where(t_idx < lengths[:, None], src, padding_idx)

    enc_output, (h_n, c_n) = encoder_forward(src, lengths, params)
    jax.block_until_ready((enc_output, h_n, c_n))

    assert enc_output.shape == (B, T, hidden_size)
    assert h_n.shape == (1, B, hidden_size)
    assert c_n.shape == (1, B, hidden_size)
    print("KERNEL_OK")
</pallas_src>

<mosaic_0001>
module attributes {stable_mosaic.version = 11 : i64} {
  func.func @_bilstm_kernel(%arg0: memref<64x32xbf16, #tpu.memory_space<vmem>>, %arg1: memref<64x1xf32, #tpu.memory_space<vmem>>, %arg2: memref<32x64xbf16, #tpu.memory_space<vmem>>, %arg3: memref<32x64xbf16, #tpu.memory_space<vmem>>, %arg4: memref<16x64xbf16, #tpu.memory_space<vmem>>, %arg5: memref<16x64xbf16, #tpu.memory_space<vmem>>, %arg6: memref<1x64xf32, #tpu.memory_space<vmem>>, %arg7: memref<1x64xf32, #tpu.memory_space<vmem>>, %arg8: memref<64x32xf32, #tpu.memory_space<vmem>>, %arg9: memref<1x8x32xf32, #tpu.memory_space<vmem>>, %arg10: memref<1x8x32xf32, #tpu.memory_space<vmem>>, %arg11: memref<64x64xf32, #tpu.memory_space<vmem>>, %arg12: memref<64x64xf32, #tpu.memory_space<vmem>>) attributes {dimension_semantics = [], scalar_prefetch = 0 : i64, scratch_operands = 2 : i64, tpu.core_type = #tpu.core_type<tc>} {
    %c0 = arith.constant 0 : index
    %c0_0 = arith.constant 0 : index
    %0 = vector.load %arg0[%c0, %c0_0] : memref<64x32xbf16, #tpu.memory_space<vmem>>, vector<64x32xbf16>
    %c0_1 = arith.constant 0 : index
    %c0_2 = arith.constant 0 : index
    %1 = vector.load %arg2[%c0_1, %c0_2] : memref<32x64xbf16, #tpu.memory_space<vmem>>, vector<32x64xbf16>
    %cst = arith.constant dense<0.000000e+00> : vector<64x64xf32>
    %2 = tpu.matmul %0, %1, %cst {dimension_numbers = #tpu.dot_dimension_numbers<[1], [0], [0], [1], [0, 0, 1, 1], [], []>} : vector<64x32xbf16>, vector<32x64xbf16>, vector<64x64xf32> -> vector<64x64xf32>
    %c0_3 = arith.constant 0 : index
    %c0_4 = arith.constant 0 : index
    %3 = vector.load %arg6[%c0_3, %c0_4] : memref<1x64xf32, #tpu.memory_space<vmem>>, vector<1x64xf32>
    %4 = vector.broadcast %3 : vector<1x64xf32> to vector<64x64xf32>
    %5 = arith.addf %2, %4 : vector<64x64xf32>
    %c0_5 = arith.constant 0 : index
    %c0_6 = arith.constant 0 : index
    %6 = vector.load %arg11[%c0_5, %c0_6] : memref<64x64xf32, #tpu.memory_space<vmem>>, vector<64x64xf32>
    tpu.vector_store %arg11[%c0_5, %c0_6], %5 {strides = array<i32>} : memref<64x64xf32, #tpu.memory_space<vmem>>, vector<64x64xf32>,
    %c0_7 = arith.constant 0 : index
    %c0_8 = arith.constant 0 : index
    %7 = vector.load %arg3[%c0_7, %c0_8] : memref<32x64xbf16, #tpu.memory_space<vmem>>, vector<32x64xbf16>
    %cst_9 = arith.constant dense<0.000000e+00> : vector<64x64xf32>
    %8 = tpu.matmul %0, %7, %cst_9 {dimension_numbers = #tpu.dot_dimension_numbers<[1], [0], [0], [1], [0, 0, 1, 1], [], []>} : vector<64x32xbf16>, vector<32x64xbf16>, vector<64x64xf32> -> vector<64x64xf32>
    %c0_10 = arith.constant 0 : index
    %c0_11 = arith.constant 0 : index
    %9 = vector.load %arg7[%c0_10, %c0_11] : memref<1x64xf32, #tpu.memory_space<vmem>>, vector<1x64xf32>
    %10 = vector.broadcast %9 : vector<1x64xf32> to vector<64x64xf32>
    %11 = arith.addf %8, %10 : vector<64x64xf32>
    %c0_12 = arith.constant 0 : index
    %c0_13 = arith.constant 0 : index
    %12 = vector.load %arg12[%c0_12, %c0_13] : memref<64x64xf32, #tpu.memory_space<vmem>>, vector<64x64xf32>
    tpu.vector_store %arg12[%c0_12, %c0_13], %11 {strides = array<i32>} : memref<64x64xf32, #tpu.memory_space<vmem>>, vector<64x64xf32>,
    %c0_14 = arith.constant 0 : index
    %c0_15 = arith.constant 0 : index
    %13 = vector.load %arg4[%c0_14, %c0_15] : memref<16x64xbf16, #tpu.memory_space<vmem>>, vector<16x64xbf16>
    %c0_16 = arith.constant 0 : index
    %c0_17 = arith.constant 0 : index
    %14 = vector.load %arg5[%c0_16, %c0_17] : memref<16x64xbf16, #tpu.memory_space<vmem>>, vector<16x64xbf16>
    %15 = tpu.iota {dimensions = array<i32: 1>} : vector<8x64xi32>
    %c32_i32 = arith.constant 32 : i32
    %16 = vector.broadcast %c32_i32 : i32 to vector<8x64xi32>
    %17 = arith.cmpi sge, %15, %16 : vector<8x64xi32>
    %c48_i32 = arith.constant 48 : i32
    %18 = vector.broadcast %c48_i32 : i32 to vector<8x64xi32>
    %19 = arith.cmpi slt, %15, %18 : vector<8x64xi32>
    %20 = arith.andi %17, %19 : vector<8x64xi1>
    %cst_18 = arith.constant 1.000000e+00 : f32
    %cst_19 = arith.constant 5.000000e-01 : f32
    %21 = vector.broadcast %cst_18 : f32 to vector<8x64xf32>
    %22 = vector.broadcast %cst_19 : f32 to vector<8x64xf32>
    %23 = arith.select %20, %21, %22 : vector<8x64xi1>, vector<8x64xf32>
    %cst_20 = arith.constant 0.000000e+00 : f32
    %cst_21 = arith.constant 5.000000e-01 : f32
    %24 = vector.broadcast %cst_20 : f32 to vector<8x64xf32>
    %25 = vector.broadcast %cst_21 : f32 to vector<8x64xf32>
    %26 = arith.select %20, %24, %25 : vector<8x64xi1>, vector<8x64xf32>
    %cst_22 = arith.constant 0.000000e+00 : f32
    %27 = vector.broadcast %cst_22 : f32 to vector<8x16xf32>
    %c0_i32 = arith.constant 0 : i32
    %c8_i32 = arith.constant 8 : i32
    %28 = arith.muli %c0_i32, %c8_i32 : i32
    %29 = tpu.assume_multiple %28, 8 : i32
    %c7_i32 = arith.constant 7 : i32
    %30 = arith.subi %c7_i32, %c0_i32 : i32
    %c8_i32_23 = arith.constant 8 : i32
    %31 = arith.muli %30, %c8_i32_23 : i32
    %32 = tpu.assume_multiple %31, 8 : i32
    %33 = arith.index_cast %29 : i32 to index
    %c0_24 = arith.constant 0 : index
    %34 = vector.load %arg11[%33, %c0_24] : memref<64x64xf32, #tpu.memory_space<vmem>>, vector<8x64xf32>
    %35 = arith.truncf %27 : vector<8x16xf32> to vector<8x16xbf16>
    %cst_25 = arith.constant dense<0.000000e+00> : vector<8x64xf32>
    %36 = tpu.matmul %35, %13, %cst_25 {dimension_numbers = #tpu.dot_dimension_numbers<[1], [0], [0], [1], [0, 0, 1, 1], [], []>} : vector<8x16xbf16>, vector<16x64xbf16>, vector<8x64xf32> -> vector<8x64xf32>
    %37 = arith.addf %36, %34 : vector<8x64xf32>
    %38 = math.tanh %37 : vector<8x64xf32>
    %39 = arith.mulf %38, %23 : vector<8x64xf32>
    %40 = arith.addf %39, %26 : vector<8x64xf32>
    %41 = vector.extract_strided_slice %40 {offsets = [0, 16], sizes = [8, 16], strides = [1, 1]} : vector<8x64xf32> to vector<8x16xf32>
    %42 = arith.mulf %41, %27 : vector<8x16xf32>
    %43 = vector.extract_strided_slice %40 {offsets = [0, 0], sizes = [8, 16], strides = [1, 1]} : vector<8x64xf32> to vector<8x16xf32>
    %44 = vector.extract_strided_slice %40 {offsets = [0, 32], sizes = [8, 16], strides = [1, 1]} : vector<8x64xf32> to vector<8x16xf32>
    %45 = arith.mulf %43, %44 : vector<8x16xf32>
    %46 = arith.addf %42, %45 : vector<8x16xf32>
    %47 = vector.extract_strided_slice %40 {offsets = [0, 48], sizes = [8, 16], strides = [1, 1]} : vector<8x64xf32> to vector<8x16xf32>
    %48 = math.tanh %46 : vector<8x16xf32>
    %49 = arith.mulf %47, %48 : vector<8x16xf32>
    %50 = arith.index_cast %32 : i32 to index
    %c0_26 = arith.constant 0 : index
    %51 = vector.load %arg12[%50, %c0_26] : memref<64x64xf32, #tpu.memory_space<vmem>>, vector<8x64xf32>
    %52 = arith.truncf %27 : vector<8x16xf32> to vector<8x16xbf16>
    %cst_27 = arith.constant dense<0.000000e+00> : vector<8x64xf32>
    %53 = tpu.matmul %52, %14, %cst_27 {dimension_numbers = #tpu.dot_dimension_numbers<[1], [0], [0], [1], [0, 0, 1, 1], [], []>} : vector<8x16xbf16>, vector<16x64xbf16>, vector<8x64xf32> -> vector<8x64xf32>
    %54 = arith.addf %53, %51 : vector<8x64xf32>
    %55 = math.tanh %54 : vector<8x64xf32>
    %56 = arith.mulf %55, %23 : vector<8x64xf32>
    %57 = arith.addf %56, %26 : vector<8x64xf32>
    %58 = vector.extract_strided_slice %57 {offsets = [0, 16], sizes = [8, 16], strides = [1, 1]} : vector<8x64xf32> to vector<8x16xf32>
    %59 = arith.mulf %58, %27 : vector<8x16xf32>
    %60 = vector.extract_strided_slice %57 {offsets = [0, 0], sizes = [8, 16], strides = [1, 1]} : vector<8x64xf32> to vector<8x16xf32>
    %61 = vector.extract_strided_slice %57 {offsets = [0, 32], sizes = [8, 16], strides = [1, 1]} : vector<8x64xf32> to vector<8x16xf32>
    %62 = arith.mulf %60, %61 : vector<8x16xf32>
    %63 = arith.addf %59, %62 : vector<8x16xf32>
    %64 = vector.extract_strided_slice %57 {offsets = [0, 48], sizes = [8, 16], strides = [1, 1]} : vector<8x64xf32> to vector<8x16xf32>
    %65 = math.tanh %63 : vector<8x16xf32>
    %66 = arith.mulf %64, %65 : vector<8x16xf32>
    %67 = arith.index_cast %29 : i32 to index
    %c0_28 = arith.constant 0 : index
    %68 = vector.load %arg1[%67, %c0_28] : memref<64x1xf32, #tpu.memory_space<vmem>>, vector<8x1xf32>
    %cst_29 = arith.constant 0.000000e+00 : f32
    %69 = vector.broadcast %cst_29 : f32 to vector<8x1xf32>
    %70 = arith.cmpf ogt, %68, %69 : vector<8x1xf32>
    %71 = arith.index_cast %32 : i32 to index
    %c0_30 = arith.constant 0 : index
    %72 = vector.load %arg1[%71, %c0_30] : memref<64x1xf32, #tpu.memory_space<vmem>>, vector<8x1xf32>
    %cst_31 = arith.constant 0.000000e+00 : f32
    %73 = vector.broadcast %cst_31 : f32 to vector<8x1xf32>
    %74 = arith.cmpf ogt, %72, %73 : vector<8x1xf32>
    %cst_32 = arith.constant 0.000000e+00 : f32
    %75 = vector.shape_cast %70 : vector<8x1xi1> to vector<8x1xi1>
    %76 = vector.broadcast %75 : vector<8x1xi1> to vector<8x16xi1>
    %77 = vector.broadcast %cst_32 : f32 to vector<8x16xf32>
    %78 = arith.select %76, %49, %77 : vector<8x16xi1>, vector<8x16xf32>
    %79 = arith.index_cast %29 : i32 to index
    %c0_33 = arith.constant 0 : index
    %80 = vector.load %arg8[%79, %c0_33] : memref<64x32xf32, #tpu.memory_space<vmem>>, vector<8x16xf32>
    tpu.vector_store %arg8[%79, %c0_33], %78 {strides = array<i32>} : memref<64x32xf32, #tpu.memory_space<vmem>>, vector<8x16xf32>,
    %cst_34 = arith.constant 0.000000e+00 : f32
    %81 = vector.shape_cast %74 : vector<8x1xi1> to vector<8x1xi1>
    %82 = vector.broadcast %81 : vector<8x1xi1> to vector<8x16xi1>
    %83 = vector.broadcast %cst_34 : f32 to vector<8x16xf32>
    %84 = arith.select %82, %66, %83 : vector<8x16xi1>, vector<8x16xf32>
    %85 = arith.index_cast %32 : i32 to index
    %c16 = arith.constant 16 : index
    %86 = vector.load %arg8[%85, %c16] : memref<64x32xf32, #tpu.memory_space<vmem>>, vector<8x16xf32>
    tpu.vector_store %arg8[%85, %c16], %84 {strides = array<i32>} : memref<64x32xf32, #tpu.memory_space<vmem>>, vector<8x16xf32>,
    %87 = vector.shape_cast %70 : vector<8x1xi1> to vector<8x1xi1>
    %88 = vector.broadcast %87 : vector<8x1xi1> to vector<8x16xi1>
    %89 = arith.select %88, %49, %27 : vector<8x16xi1>, vector<8x16xf32>
    %90 = vector.shape_cast %70 : vector<8x1xi1> to vector<8x1xi1>
    %91 = vector.broadcast %90 : vector<8x1xi1> to vector<8x16xi1>
    %92 = arith.select %91, %46, %27 : vector<8x16xi1>, vector<8x16xf32>
    %93 = vector.shape_cast %74 : vector<8x1xi1> to vector<8x1xi1>
    %94 = vector.broadcast %93 : vector<8x1xi1> to vector<8x16xi1>
    %95 = arith.select %94, %66, %27 : vector<8x16xi1>, vector<8x16xf32>
    %96 = vector.shape_cast %74 : vector<8x1xi1> to vector<8x1xi1>
    %97 = vector.broadcast %96 : vector<8x1xi1> to vector<8x16xi1>
    %98 = arith.select %97, %63, %27 : vector<8x16xi1>, vector<8x16xf32>
    %c1_i32 = arith.constant 1 : i32
    %c8_i32_35 = arith.constant 8 : i32
    %99 = arith.muli %c1_i32, %c8_i32_35 : i32
    %100 = tpu.assume_multiple %99, 8 : i32
    %c7_i32_36 = arith.constant 7 : i32
    %101 = arith.subi %c7_i32_36, %c1_i32 : i32
    %c8_i32_37 = arith.constant 8 : i32
    %102 = arith.muli %101, %c8_i32_37 : i32
    %103 = tpu.assume_multiple %102, 8 : i32
    %104 = arith.index_cast %100 : i32 to index
    %c0_38 = arith.constant 0 : index
    %105 = vector.load %arg11[%104, %c0_38] : memref<64x64xf32, #tpu.memory_space<vmem>>, vector<8x64xf32>
    %106 = arith.truncf %89 : vector<8x16xf32> to vector<8x16xbf16>
    %cst_39 = arith.constant dense<0.000000e+00> : vector<8x64xf32>
    %107 = tpu.matmul %106, %13, %cst_39 {dimension_numbers = #tpu.dot_dimension_numbers<[1], [0], [0], [1], [0, 0, 1, 1], [], []>} : vector<8x16xbf16>, vector<16x64xbf16>, vector<8x64xf32> -> vector<8x64xf32>
    %108 = arith.addf %107, %105 : vector<8x64xf32>
    %109 = math.tanh %108 : vector<8x64xf32>
    %110 = arith.mulf %109, %23 : vector<8x64xf32>
    %111 = arith.addf %110, %26 : vector<8x64xf32>
    %112 = vector.extract_strided_slice %111 {offsets = [0, 16], sizes = [8, 16], strides = [1, 1]} : vector<8x64xf32> to vector<8x16xf32>
    %113 = arith.mulf %112, %92 : vector<8x16xf32>
    %114 = vector.extract_strided_slice %111 {offsets = [0, 0], sizes = [8, 16], strides = [1, 1]} : vector<8x64xf32> to vector<8x16xf32>
    %115 = vector.extract_strided_slice %111 {offsets = [0, 32], sizes = [8, 16], strides = [1, 1]} : vector<8x64xf32> to vector<8x16xf32>
    %116 = arith.mulf %114, %115 : vector<8x16xf32>
    %117 = arith.addf %113, %116 : vector<8x16xf32>
    %118 = vector.extract_strided_slice %111 {offsets = [0, 48], sizes = [8, 16], strides = [1, 1]} : vector<8x64xf32> to vector<8x16xf32>
    %119 = math.tanh %117 : vector<8x16xf32>
    %120 = arith.mulf %118, %119 : vector<8x16xf32>
    %121 = arith.index_cast %103 : i32 to index
    %c0_40 = arith.constant 0 : index
    %122 = vector.load %arg12[%121, %c0_40] : memref<64x64xf32, #tpu.memory_space<vmem>>, vector<8x64xf32>
    %123 = arith.truncf %95 : vector<8x16xf32> to vector<8x16xbf16>
    %cst_41 = arith.constant dense<0.000000e+00> : vector<8x64xf32>
    %124 = tpu.matmul %123, %14, %cst_41 {dimension_numbers = #tpu.dot_dimension_numbers<[1], [0], [0], [1], [0, 0, 1, 1], [], []>} : vector<8x16xbf16>, vector<16x64xbf16>, vector<8x64xf32> -> vector<8x64xf32>
    %125 = arith.addf %124, %122 : vector<8x64xf32>
    %126 = math.tanh %125 : vector<8x64xf32>
    %127 = arith.mulf %126, %23 : vector<8x64xf32>
    %128 = arith.addf %127, %26 : vector<8x64xf32>
    %129 = vector.extract_strided_slice %128 {offsets = [0, 16], sizes = [8, 16], strides = [1, 1]} : vector<8x64xf32> to vector<8x16xf32>
    %130 = arith.mulf %129, %98 : vector<8x16xf32>
    %131 = vector.extract_strided_slice %128 {offsets = [0, 0], sizes = [8, 16], strides = [1, 1]} : vector<8x64xf32> to vector<8x16xf32>
    %132 = vector.extract_strided_slice %128 {offsets = [0, 32], sizes = [8, 16], strides = [1, 1]} : vector<8x64xf32> to vector<8x16xf32>
    %133 = arith.mulf %131, %132 : vector<8x16xf32>
    %134 = arith.addf %130, %133 : vector<8x16xf32>
    %135 = vector.extract_strided_slice %128 {offsets = [0, 48], sizes = [8, 16], strides = [1, 1]} : vector<8x64xf32> to vector<8x16xf32>
    %136 = math.tanh %134 : vector<8x16xf32>
    %137 = arith.mulf %135, %136 : vector<8x16xf32>
    %138 = arith.index_cast %100 : i32 to index
    %c0_42 = arith.constant 0 : index
    %139 = vector.load %arg1[%138, %c0_42] : memref<64x1xf32, #tpu.memory_space<vmem>>, vector<8x1xf32>
    %cst_43 = arith.constant 0.000000e+00 : f32
    %140 = vector.broadcast %cst_43 : f32 to vector<8x1xf32>
    %141 = arith.cmpf ogt, %139, %140 : vector<8x1xf32>
    %142 = arith.index_cast %103 : i32 to index
    %c0_44 = arith.constant 0 : index
    %143 = vector.load %arg1[%142, %c0_44] : memref<64x1xf32, #tpu.memory_space<vmem>>, vector<8x1xf32>
    %cst_45 = arith.constant 0.000000e+00 : f32
    %144 = vector.broadcast %cst_45 : f32 to vector<8x1xf32>
    %145 = arith.cmpf ogt, %143, %144 : vector<8x1xf32>
    %cst_46 = arith.constant 0.000000e+00 : f32
    %146 = vector.shape_cast %141 : vector<8x1xi1> to vector<8x1xi1>
    %147 = vector.broadcast %146 : vector<8x1xi1> to vector<8x16xi1>
    %148 = vector.broadcast %cst_46 : f32 to vector<8x16xf32>
    %149 = arith.select %147, %120, %148 : vector<8x16xi1>, vector<8x16xf32>
    %150 = arith.index_cast %100 : i32 to index
    %c0_47 = arith.constant 0 : index
    %151 = vector.load %arg8[%150, %c0_47] : memref<64x32xf32, #tpu.memory_space<vmem>>, vector<8x16xf32>
    tpu.vector_store %arg8[%150, %c0_47], %149 {strides = array<i32>} : memref<64x32xf32, #tpu.memory_space<vmem>>, vector<8x16xf32>,
    %cst_48 = arith.constant 0.000000e+00 : f32
    %152 = vector.shape_cast %145 : vector<8x1xi1> to vector<8x1xi1>
    %153 = vector.broadcast %152 : vector<8x1xi1> to vector<8x16xi1>
    %154 = vector.broadcast %cst_48 : f32 to vector<8x16xf32>
    %155 = arith.select %153, %137, %154 : vector<8x16xi1>, vector<8x16xf32>
    %156 = arith.index_cast %103 : i32 to index
    %c16_49 = arith.constant 16 : index
    %157 = vector.load %arg8[%156, %c16_49] : memref<64x32xf32, #tpu.memory_space<vmem>>, vector<8x16xf32>
    tpu.vector_store %arg8[%156, %c16_49], %155 {strides = array<i32>} : memref<64x32xf32, #tpu.memory_space<vmem>>, vector<8x16xf32>,
    %158 = vector.shape_cast %141 : vector<8x1xi1> to vector<8x1xi1>
    %159 = vector.broadcast %158 : vector<8x1xi1> to vector<8x16xi1>
    %160 = arith.select %159, %120, %89 : vector<8x16xi1>, vector<8x16xf32>
    %161 = vector.shape_cast %141 : vector<8x1xi1> to vector<8x1xi1>
    %162 = vector.broadcast %161 : vector<8x1xi1> to vector<8x16xi1>
    %163 = arith.select %162, %117, %92 : vector<8x16xi1>, vector<8x16xf32>
    %164 = vector.shape_cast %145 : vector<8x1xi1> to vector<8x1xi1>
    %165 = vector.broadcast %164 : vector<8x1xi1> to vector<8x16xi1>
    %166 = arith.select %165, %137, %95 : vector<8x16xi1>, vector<8x16xf32>
    %167 = vector.shape_cast %145 : vector<8x1xi1> to vector<8x1xi1>
    %168 = vector.broadcast %167 : vector<8x1xi1> to vector<8x16xi1>
    %169 = arith.select %168, %134, %98 : vector<8x16xi1>, vector<8x16xf32>
    %c2_i32 = arith.constant 2 : i32
    %c8_i32_50 = arith.constant 8 : i32
    %170 = arith.muli %c2_i32, %c8_i32_50 : i32
    %171 = tpu.assume_multiple %170, 8 : i32
    %c7_i32_51 = arith.constant 7 : i32
    %172 = arith.subi %c7_i32_51, %c2_i32 : i32
    %c8_i32_52 = arith.constant 8 : i32
    %173 = arith.muli %172, %c8_i32_52 : i32
    %174 = tpu.assume_multiple %173, 8 : i32
    %175 = arith.index_cast %171 : i32 to index
    %c0_53 = arith.constant 0 : index
    %176 = vector.load %arg11[%175, %c0_53] : memref<64x64xf32, #tpu.memory_space<vmem>>, vector<8x64xf32>
    %177 = arith.truncf %160 : vector<8x16xf32> to vector<8x16xbf16>
    %cst_54 = arith.constant dense<0.000000e+00> : vector<8x64xf32>
    %178 = tpu.matmul %177, %13, %cst_54 {dimension_numbers = #tpu.dot_dimension_numbers<[1], [0], [0], [1], [0, 0, 1, 1], [], []>} : vector<8x16xbf16>, vector<16x64xbf16>, vector<8x64xf32> -> vector<8x64xf32>
    %179 = arith.addf %178, %176 : vector<8x64xf32>
    %180 = math.tanh %179 : vector<8x64xf32>
    %181 = arith.mulf %180, %23 : vector<8x64xf32>
    %182 = arith.addf %181, %26 : vector<8x64xf32>
    %183 = vector.extract_strided_slice %182 {offsets = [0, 16], sizes = [8, 16], strides = [1, 1]} : vector<8x64xf32> to vector<8x16xf32>
    %184 = arith.mulf %183, %163 : vector<8x16xf32>
    %185 = vector.extract_strided_slice %182 {offsets = [0, 0], sizes = [8, 16], strides = [1, 1]} : vector<8x64xf32> to vector<8x16xf32>
    %186 = vector.extract_strided_slice %182 {offsets = [0, 32], sizes = [8, 16], strides = [1, 1]} : vector<8x64xf32> to vector<8x16xf32>
    %187 = arith.mulf %185, %186 : vector<8x16xf32>
    %188 = arith.addf %184, %187 : vector<8x16xf32>
    %189 = vector.extract_strided_slice %182 {offsets = [0, 48], sizes = [8, 16], strides = [1, 1]} : vector<8x64xf32> to vector<8x16xf32>
    %190 = math.tanh %188 : vector<8x16xf32>
    %191 = arith.mulf %189, %190 : vector<8x16xf32>
    %192 = arith.index_cast %174 : i32 to index
    %c0_55 = arith.constant 0 : index
    %193 = vector.load %arg12[%192, %c0_55] : memref<64x64xf32, #tpu.memory_space<vmem>>, vector<8x64xf32>
    %194 = arith.truncf %166 : vector<8x16xf32> to vector<8x16xbf16>
    %cst_56 = arith.constant dense<0.000000e+00> : vector<8x64xf32>
    %195 = tpu.matmul %194, %14, %cst_56 {dimension_numbers = #tpu.dot_dimension_numbers<[1], [0], [0], [1], [0, 0, 1, 1], [], []>} : vector<8x16xbf16>, vector<16x64xbf16>, vector<8x64xf32> -> vector<8x64xf32>
    %196 = arith.addf %195, %193 : vector<8x64xf32>
    %197 = math.tanh %196 : vector<8x64xf32>
    %198 = arith.mulf %197, %23 : vector<8x64xf32>
    %199 = arith.addf %198, %26 : vector<8x64xf32>
    %200 = vector.extract_strided_slice %199 {offsets = [0, 16], sizes = [8, 16], strides = [1, 1]} : vector<8x64xf32> to vector<8x16xf32>
    %201 = arith.mulf %200, %169 : vector<8x16xf32>
    %202 = vector.extract_strided_slice %199 {offsets = [0, 0], sizes = [8, 16], strides = [1, 1]} : vector<8x64xf32> to vector<8x16xf32>
    %203 = vector.extract_strided_slice %199 {offsets = [0, 32], sizes = [8, 16], strides = [1, 1]} : vector<8x64xf32> to vector<8x16xf32>
    %204 = arith.mulf %202, %203 : vector<8x16xf32>
    %205 = arith.addf %201, %204 : vector<8x16xf32>
    %206 = vector.extract_strided_slice %199 {offsets = [0, 48], sizes = [8, 16], strides = [1, 1]} : vector<8x64xf32> to vector<8x16xf32>
    %207 = math.tanh %205 : vector<8x16xf32>
    %208 = arith.mulf %206, %207 : vector<8x16xf32>
    %209 = arith.index_cast %171 : i32 to index
    %c0_57 = arith.constant 0 : index
    %210 = vector.load %arg1[%209, %c0_57] : memref<64x1xf32, #tpu.memory_space<vmem>>, vector<8x1xf32>
    %cst_58 = arith.constant 0.000000e+00 : f32
    %211 = vector.broadcast %cst_58 : f32 to vector<8x1xf32>
    %212 = arith.cmpf ogt, %210, %211 : vector<8x1xf32>
    %213 = arith.index_cast %174 : i32 to index
    %c0_59 = arith.constant 0 : index
    %214 = vector.load %arg1[%213, %c0_59] : memref<64x1xf32, #tpu.memory_space<vmem>>, vector<8x1xf32>
    %cst_60 = arith.constant 0.000000e+00 : f32
    %215 = vector.broadcast %cst_60 : f32 to vector<8x1xf32>
    %216 = arith.cmpf ogt, %214, %215 : vector<8x1xf32>
    %cst_61 = arith.constant 0.000000e+00 : f32
    %217 = vector.shape_cast %212 : vector<8x1xi1> to vector<8x1xi1>
    %218 = vector.broadcast %217 : vector<8x1xi1> to vector<8x16xi1>
    %219 = vector.broadcast %cst_61 : f32 to vector<8x16xf32>
    %220 = arith.select %218, %191, %219 : vector<8x16xi1>, vector<8x16xf32>
    %221 = arith.index_cast %171 : i32 to index
    %c0_62 = arith.constant 0 : index
    %222 = vector.load %arg8[%221, %c0_62] : memref<64x32xf32, #tpu.memory_space<vmem>>, vector<8x16xf32>
    tpu.vector_store %arg8[%221, %c0_62], %220 {strides = array<i32>} : memref<64x32xf32, #tpu.memory_space<vmem>>, vector<8x16xf32>,
    %cst_63 = arith.constant 0.000000e+00 : f32
    %223 = vector.shape_cast %216 : vector<8x1xi1> to vector<8x1xi1>
    %224 = vector.broadcast %223 : vector<8x1xi1> to vector<8x16xi1>
    %225 = vector.broadcast %cst_63 : f32 to vector<8x16xf32>
    %226 = arith.select %224, %208, %225 : vector<8x16xi1>, vector<8x16xf32>
    %227 = arith.index_cast %174 : i32 to index
    %c16_64 = arith.constant 16 : index
    %228 = vector.load %arg8[%227, %c16_64] : memref<64x32xf32, #tpu.memory_space<vmem>>, vector<8x16xf32>
    tpu.vector_store %arg8[%227, %c16_64], %226 {strides = array<i32>} : memref<64x32xf32, #tpu.memory_space<vmem>>, vector<8x16xf32>,
    %229 = vector.shape_cast %212 : vector<8x1xi1> to vector<8x1xi1>
    %230 = vector.broadcast %229 : vector<8x1xi1> to vector<8x16xi1>
    %231 = arith.select %230, %191, %160 : vector<8x16xi1>, vector<8x16xf32>
    %232 = vector.shape_cast %212 : vector<8x1xi1> to vector<8x1xi1>
    %233 = vector.broadcast %232 : vector<8x1xi1> to vector<8x16xi1>
    %234 = arith.select %233, %188, %163 : vector<8x16xi1>, vector<8x16xf32>
    %235 = vector.shape_cast %216 : vector<8x1xi1> to vector<8x1xi1>
    %236 = vector.broadcast %235 : vector<8x1xi1> to vector<8x16xi1>
    %237 = arith.select %236, %208, %166 : vector<8x16xi1>, vector<8x16xf32>
    %238 = vector.shape_cast %216 : vector<8x1xi1> to vector<8x1xi1>
    %239 = vector.broadcast %238 : vector<8x1xi1> to vector<8x16xi1>
    %240 = arith.select %239, %205, %169 : vector<8x16xi1>, vector<8x16xf32>
    %c3_i32 = arith.constant 3 : i32
    %c8_i32_65 = arith.constant 8 : i32
    %241 = arith.muli %c3_i32, %c8_i32_65 : i32
    %242 = tpu.assume_multiple %241, 8 : i32
    %c7_i32_66 = arith.constant 7 : i32
    %243 = arith.subi %c7_i32_66, %c3_i32 : i32
    %c8_i32_67 = arith.constant 8 : i32
    %244 = arith.muli %243, %c8_i32_67 : i32
    %245 = tpu.assume_multiple %244, 8 : i32
    %246 = arith.index_cast %242 : i32 to index
    %c0_68 = arith.constant 0 : index
    %247 = vector.load %arg11[%246, %c0_68] : memref<64x64xf32, #tpu.memory_space<vmem>>, vector<8x64xf32>
    %248 = arith.truncf %231 : vector<8x16xf32> to vector<8x16xbf16>
    %cst_69 = arith.constant dense<0.000000e+00> : vector<8x64xf32>
    %249 = tpu.matmul %248, %13, %cst_69 {dimension_numbers = #tpu.dot_dimension_numbers<[1], [0], [0], [1], [0, 0, 1, 1], [], []>} : vector<8x16xbf16>, vector<16x64xbf16>, vector<8x64xf32> -> vector<8x64xf32>
    %250 = arith.addf %249, %247 : vector<8x64xf32>
    %251 = math.tanh %250 : vector<8x64xf32>
    %252 = arith.mulf %251, %23 : vector<8x64xf32>
    %253 = arith.addf %252, %26 : vector<8x64xf32>
    %254 = vector.extract_strided_slice %253 {offsets = [0, 16], sizes = [8, 16], strides = [1, 1]} : vector<8x64xf32> to vector<8x16xf32>
    %255 = arith.mulf %254, %234 : vector<8x16xf32>
    %256 = vector.extract_strided_slice %253 {offsets = [0, 0], sizes = [8, 16], strides = [1, 1]} : vector<8x64xf32> to vector<8x16xf32>
    %257 = vector.extract_strided_slice %253 {offsets = [0, 32], sizes = [8, 16], strides = [1, 1]} : vector<8x64xf32> to vector<8x16xf32>
    %258 = arith.mulf %256, %257 : vector<8x16xf32>
    %259 = arith.addf %255, %258 : vector<8x16xf32>
    %260 = vector.extract_strided_slice %253 {offsets = [0, 48], sizes = [8, 16], strides = [1, 1]} : vector<8x64xf32> to vector<8x16xf32>
    %261 = math.tanh %259 : vector<8x16xf32>
    %262 = arith.mulf %260, %261 : vector<8x16xf32>
    %263 = arith.index_cast %245 : i32 to index
    %c0_70 = arith.constant 0 : index
    %264 = vector.load %arg12[%263, %c0_70] : memref<64x64xf32, #tpu.memory_space<vmem>>, vector<8x64xf32>
    %265 = arith.truncf %237 : vector<8x16xf32> to vector<8x16xbf16>
    %cst_71 = arith.constant dense<0.000000e+00> : vector<8x64xf32>
    %266 = tpu.matmul %265, %14, %cst_71 {dimension_numbers = #tpu.dot_dimension_numbers<[1], [0], [0], [1], [0, 0, 1, 1], [], []>} : vector<8x16xbf16>, vector<16x64xbf16>, vector<8x64xf32> -> vector<8x64xf32>
    %267 = arith.addf %266, %264 : vector<8x64xf32>
    %268 = math.tanh %267 : vector<8x64xf32>
    %269 = arith.mulf %268, %23 : vector<8x64xf32>
    %270 = arith.addf %269, %26 : vector<8x64xf32>
    %271 = vector.extract_strided_slice %270 {offsets = [0, 16], sizes = [8, 16], strides = [1, 1]} : vector<8x64xf32> to vector<8x16xf32>
    %272 = arith.mulf %271, %240 : vector<8x16xf32>
    %273 = vector.extract_strided_slice %270 {offsets = [0, 0], sizes = [8, 16], strides = [1, 1]} : vector<8x64xf32> to vector<8x16xf32>
    %274 = vector.extract_strided_slice %270 {offsets = [0, 32], sizes = [8, 16], strides = [1, 1]} : vector<8x64xf32> to vector<8x16xf32>
    %275 = arith.mulf %273, %274 : vector<8x16xf32>
    %276 = arith.addf %272, %275 : vector<8x16xf32>
    %277 = vector.extract_strided_slice %270 {offsets = [0, 48], sizes = [8, 16], strides = [1, 1]} : vector<8x64xf32> to vector<8x16xf32>
    %278 = math.tanh %276 : vector<8x16xf32>
    %279 = arith.mulf %277, %278 : vector<8x16xf32>
    %280 = arith.index_cast %242 : i32 to index
    %c0_72 = arith.constant 0 : index
    %281 = vector.load %arg1[%280, %c0_72] : memref<64x1xf32, #tpu.memory_space<vmem>>, vector<8x1xf32>
    %cst_73 = arith.constant 0.000000e+00 : f32
    %282 = vector.broadcast %cst_73 : f32 to vector<8x1xf32>
    %283 = arith.cmpf ogt, %281, %282 : vector<8x1xf32>
    %284 = arith.index_cast %245 : i32 to index
    %c0_74 = arith.constant 0 : index
    %285 = vector.load %arg1[%284, %c0_74] : memref<64x1xf32, #tpu.memory_space<vmem>>, vector<8x1xf32>
    %cst_75 = arith.constant 0.000000e+00 : f32
    %286 = vector.broadcast %cst_75 : f32 to vector<8x1xf32>
    %287 = arith.cmpf ogt, %285, %286 : vector<8x1xf32>
    %cst_76 = arith.constant 0.000000e+00 : f32
    %288 = vector.shape_cast %283 : vector<8x1xi1> to vector<8x1xi1>
    %289 = vector.broadcast %288 : vector<8x1xi1> to vector<8x16xi1>
    %290 = vector.broadcast %cst_76 : f32 to vector<8x16xf32>
    %291 = arith.select %289, %262, %290 : vector<8x16xi1>, vector<8x16xf32>
    %292 = arith.index_cast %242 : i32 to index
    %c0_77 = arith.constant 0 : index
    %293 = vector.load %arg8[%292, %c0_77] : memref<64x32xf32, #tpu.memory_space<vmem>>, vector<8x16xf32>
    tpu.vector_store %arg8[%292, %c0_77], %291 {strides = array<i32>} : memref<64x32xf32, #tpu.memory_space<vmem>>, vector<8x16xf32>,
    %cst_78 = arith.constant 0.000000e+00 : f32
    %294 = vector.shape_cast %287 : vector<8x1xi1> to vector<8x1xi1>
    %295 = vector.broadcast %294 : vector<8x1xi1> to vector<8x16xi1>
    %296 = vector.broadcast %cst_78 : f32 to vector<8x16xf32>
    %297 = arith.select %295, %279, %296 : vector<8x16xi1>, vector<8x16xf32>
    %298 = arith.index_cast %245 : i32 to index
    %c16_79 = arith.constant 16 : index
    %299 = vector.load %arg8[%298, %c16_79] : memref<64x32xf32, #tpu.memory_space<vmem>>, vector<8x16xf32>
    tpu.vector_store %arg8[%298, %c16_79], %297 {strides = array<i32>} : memref<64x32xf32, #tpu.memory_space<vmem>>, vector<8x16xf32>,
    %300 = vector.shape_cast %283 : vector<8x1xi1> to vector<8x1xi1>
    %301 = vector.broadcast %300 : vector<8x1xi1> to vector<8x16xi1>
    %302 = arith.select %301, %262, %231 : vector<8x16xi1>, vector<8x16xf32>
    %303 = vector.shape_cast %283 : vector<8x1xi1> to vector<8x1xi1>
    %304 = vector.broadcast %303 : vector<8x1xi1> to vector<8x16xi1>
    %305 = arith.select %304, %259, %234 : vector<8x16xi1>, vector<8x16xf32>
    %306 = vector.shape_cast %287 : vector<8x1xi1> to vector<8x1xi1>
    %307 = vector.broadcast %306 : vector<8x1xi1> to vector<8x16xi1>
    %308 = arith.select %307, %279, %237 : vector<8x16xi1>, vector<8x16xf32>
    %309 = vector.shape_cast %287 : vector<8x1xi1> to vector<8x1xi1>
    %310 = vector.broadcast %309 : vector<8x1xi1> to vector<8x16xi1>
    %311 = arith.select %310, %276, %240 : vector<8x16xi1>, vector<8x16xf32>
    %c4_i32 = arith.constant 4 : i32
    %c8_i32_80 = arith.constant 8 : i32
    %312 = arith.muli %c4_i32, %c8_i32_80 : i32
    %313 = tpu.assume_multiple %312, 8 : i32
    %c7_i32_81 = arith.constant 7 : i32
    %314 = arith.subi %c7_i32_81, %c4_i32 : i32
    %c8_i32_82 = arith.constant 8 : i32
    %315 = arith.muli %314, %c8_i32_82 : i32
    %316 = tpu.assume_multiple %315, 8 : i32
    %317 = arith.index_cast %313 : i32 to index
    %c0_83 = arith.constant 0 : index
    %318 = vector.load %arg11[%317, %c0_83] : memref<64x64xf32, #tpu.memory_space<vmem>>, vector<8x64xf32>
    %319 = arith.truncf %302 : vector<8x16xf32> to vector<8x16xbf16>
    %cst_84 = arith.constant dense<0.000000e+00> : vector<8x64xf32>
    %320 = tpu.matmul %319, %13, %cst_84 {dimension_numbers = #tpu.dot_dimension_numbers<[1], [0], [0], [1], [0, 0, 1, 1], [], []>} : vector<8x16xbf16>, vector<16x64xbf16>, vector<8x64xf32> -> vector<8x64xf32>
    %321 = arith.addf %320, %318 : vector<8x64xf32>
    %322 = math.tanh %321 : vector<8x64xf32>
    %323 = arith.mulf %322, %23 : vector<8x64xf32>
    %324 = arith.addf %323, %26 : vector<8x64xf32>
    %325 = vector.extract_strided_slice %324 {offsets = [0, 16], sizes = [8, 16], strides = [1, 1]} : vector<8x64xf32> to vector<8x16xf32>
    %326 = arith.mulf %325, %305 : vector<8x16xf32>
    %327 = vector.extract_strided_slice %324 {offsets = [0, 0], sizes = [8, 16], strides = [1, 1]} : vector<8x64xf32> to vector<8x16xf32>
    %328 = vector.extract_strided_slice %324 {offsets = [0, 32], sizes = [8, 16], strides = [1, 1]} : vector<8x64xf32> to vector<8x16xf32>
    %329 = arith.mulf %327, %328 : vector<8x16xf32>
    %330 = arith.addf %326, %329 : vector<8x16xf32>
    %331 = vector.extract_strided_slice %324 {offsets = [0, 48], sizes = [8, 16], strides = [1, 1]} : vector<8x64xf32> to vector<8x16xf32>
    %332 = math.tanh %330 : vector<8x16xf32>
    %333 = arith.mulf %331, %332 : vector<8x16xf32>
    %334 = arith.index_cast %316 : i32 to index
    %c0_85 = arith.constant 0 : index
    %335 = vector.load %arg12[%334, %c0_85] : memref<64x64xf32, #tpu.memory_space<vmem>>, vector<8x64xf32>
    %336 = arith.truncf %308 : vector<8x16xf32> to vector<8x16xbf16>
    %cst_86 = arith.constant dense<0.000000e+00> : vector<8x64xf32>
    %337 = tpu.matmul %336, %14, %cst_86 {dimension_numbers = #tpu.dot_dimension_numbers<[1], [0], [0], [1], [0, 0, 1, 1], [], []>} : vector<8x16xbf16>, vector<16x64xbf16>, vector<8x64xf32> -> vector<8x64xf32>
    %338 = arith.addf %337, %335 : vector<8x64xf32>
    %339 = math.tanh %338 : vector<8x64xf32>
    %340 = arith.mulf %339, %23 : vector<8x64xf32>
    %341 = arith.addf %340, %26 : vector<8x64xf32>
    %342 = vector.extract_strided_slice %341 {offsets = [0, 16], sizes = [8, 16], strides = [1, 1]} : vector<8x64xf32> to vector<8x16xf32>
    %343 = arith.mulf %342, %311 : vector<8x16xf32>
    %344 = vector.extract_strided_slice %341 {offsets = [0, 0], sizes = [8, 16], strides = [1, 1]} : vector<8x64xf32> to vector<8x16xf32>
    %345 = vector.extract_strided_slice %341 {offsets = [0, 32], sizes = [8, 16], strides = [1, 1]} : vector<8x64xf32> to vector<8x16xf32>
    %346 = arith.mulf %344, %345 : vector<8x16xf32>
    %347 = arith.addf %343, %346 : vector<8x16xf32>
    %348 = vector.extract_strided_slice %341 {offsets = [0, 48], sizes = [8, 16], strides = [1, 1]} : vector<8x64xf32> to vector<8x16xf32>
    %349 = math.tanh %347 : vector<8x16xf32>
    %350 = arith.mulf %348, %349 : vector<8x16xf32>
    %351 = arith.index_cast %313 : i32 to index
    %c0_87 = arith.constant 0 : index
    %352 = vector.load %arg1[%351, %c0_87] : memref<64x1xf32, #tpu.memory_space<vmem>>, vector<8x1xf32>
    %cst_88 = arith.constant 0.000000e+00 : f32
    %353 = vector.broadcast %cst_88 : f32 to vector<8x1xf32>
    %354 = arith.cmpf ogt, %352, %353 : vector<8x1xf32>
    %355 = arith.index_cast %316 : i32 to index
    %c0_89 = arith.constant 0 : index
    %356 = vector.load %arg1[%355, %c0_89] : memref<64x1xf32, #tpu.memory_space<vmem>>, vector<8x1xf32>
    %cst_90 = arith.constant 0.000000e+00 : f32
    %357 = vector.broadcast %cst_90 : f32 to vector<8x1xf32>
    %358 = arith.cmpf ogt, %356, %357 : vector<8x1xf32>
    %cst_91 = arith.constant 0.000000e+00 : f32
    %359 = vector.shape_cast %354 : vector<8x1xi1> to vector<8x1xi1>
    %360 = vector.broadcast %359 : vector<8x1xi1> to vector<8x16xi1>
    %361 = vector.broadcast %cst_91 : f32 to vector<8x16xf32>
    %362 = arith.select %360, %333, %361 : vector<8x16xi1>, vector<8x16xf32>
    %363 = arith.index_cast %313 : i32 to index
    %c0_92 = arith.constant 0 : index
    %364 = vector.load %arg8[%363, %c0_92] : memref<64x32xf32, #tpu.memory_space<vmem>>, vector<8x16xf32>
    tpu.vector_store %arg8[%363, %c0_92], %362 {strides = array<i32>} : memref<64x32xf32, #tpu.memory_space<vmem>>, vector<8x16xf32>,
    %cst_93 = arith.constant 0.000000e+00 : f32
    %365 = vector.shape_cast %358 : vector<8x1xi1> to vector<8x1xi1>
    %366 = vector.broadcast %365 : vector<8x1xi1> to vector<8x16xi1>
    %367 = vector.broadcast %cst_93 : f32 to vector<8x16xf32>
    %368 = arith.select %366, %350, %367 : vector<8x16xi1>, vector<8x16xf32>
    %369 = arith.index_cast %316 : i32 to index
    %c16_94 = arith.constant 16 : index
    %370 = vector.load %arg8[%369, %c16_94] : memref<64x32xf32, #tpu.memory_space<vmem>>, vector<8x16xf32>
    tpu.vector_store %arg8[%369, %c16_94], %368 {strides = array<i32>} : memref<64x32xf32, #tpu.memory_space<vmem>>, vector<8x16xf32>,
    %371 = vector.shape_cast %354 : vector<8x1xi1> to vector<8x1xi1>
    %372 = vector.broadcast %371 : vector<8x1xi1> to vector<8x16xi1>
    %373 = arith.select %372, %333, %302 : vector<8x16xi1>, vector<8x16xf32>
    %374 = vector.shape_cast %354 : vector<8x1xi1> to vector<8x1xi1>
    %375 = vector.broadcast %374 : vector<8x1xi1> to vector<8x16xi1>
    %376 = arith.select %375, %330, %305 : vector<8x16xi1>, vector<8x16xf32>
    %377 = vector.shape_cast %358 : vector<8x1xi1> to vector<8x1xi1>
    %378 = vector.broadcast %377 : vector<8x1xi1> to vector<8x16xi1>
    %379 = arith.select %378, %350, %308 : vector<8x16xi1>, vector<8x16xf32>
    %380 = vector.shape_cast %358 : vector<8x1xi1> to vector<8x1xi1>
    %381 = vector.broadcast %380 : vector<8x1xi1> to vector<8x16xi1>
    %382 = arith.select %381, %347, %311 : vector<8x16xi1>, vector<8x16xf32>
    %c5_i32 = arith.constant 5 : i32
    %c8_i32_95 = arith.constant 8 : i32
    %383 = arith.muli %c5_i32, %c8_i32_95 : i32
    %384 = tpu.assume_multiple %383, 8 : i32
    %c7_i32_96 = arith.constant 7 : i32
    %385 = arith.subi %c7_i32_96, %c5_i32 : i32
    %c8_i32_97 = arith.constant 8 : i32
    %386 = arith.muli %385, %c8_i32_97 : i32
    %387 = tpu.assume_multiple %386, 8 : i32
    %388 = arith.index_cast %384 : i32 to index
    %c0_98 = arith.constant 0 : index
    %389 = vector.load %arg11[%388, %c0_98] : memref<64x64xf32, #tpu.memory_space<vmem>>, vector<8x64xf32>
    %390 = arith.truncf %373 : vector<8x16xf32> to vector<8x16xbf16>
    %cst_99 = arith.constant dense<0.000000e+00> : vector<8x64xf32>
    %391 = tpu.matmul %390, %13, %cst_99 {dimension_numbers = #tpu.dot_dimension_numbers<[1], [0], [0], [1], [0, 0, 1, 1], [], []>} : vector<8x16xbf16>, vector<16x64xbf16>, vector<8x64xf32> -> vector<8x64xf32>
    %392 = arith.addf %391, %389 : vector<8x64xf32>
    %393 = math.tanh %392 : vector<8x64xf32>
    %394 = arith.mulf %393, %23 : vector<8x64xf32>
    %395 = arith.addf %394, %26 : vector<8x64xf32>
    %396 = vector.extract_strided_slice %395 {offsets = [0, 16], sizes = [8, 16], strides = [1, 1]} : vector<8x64xf32> to vector<8x16xf32>
    %397 = arith.mulf %396, %376 : vector<8x16xf32>
    %398 = vector.extract_strided_slice %395 {offsets = [0, 0], sizes = [8, 16], strides = [1, 1]} : vector<8x64xf32> to vector<8x16xf32>
    %399 = vector.extract_strided_slice %395 {offsets = [0, 32], sizes = [8, 16], strides = [1, 1]} : vector<8x64xf32> to vector<8x16xf32>
    %400 = arith.mulf %398, %399 : vector<8x16xf32>
    %401 = arith.addf %397, %400 : vector<8x16xf32>
    %402 = vector.extract_strided_slice %395 {offsets = [0, 48], sizes = [8, 16], strides = [1, 1]} : vector<8x64xf32> to vector<8x16xf32>
    %403 = math.tanh %401 : vector<8x16xf32>
    %404 = arith.mulf %402, %403 : vector<8x16xf32>
    %405 = arith.index_cast %387 : i32 to index
    %c0_100 = arith.constant 0 : index
    %406 = vector.load %arg12[%405, %c0_100] : memref<64x64xf32, #tpu.memory_space<vmem>>, vector<8x64xf32>
    %407 = arith.truncf %379 : vector<8x16xf32> to vector<8x16xbf16>
    %cst_101 = arith.constant dense<0.000000e+00> : vector<8x64xf32>
    %408 = tpu.matmul %407, %14, %cst_101 {dimension_numbers = #tpu.dot_dimension_numbers<[1], [0], [0], [1], [0, 0, 1, 1], [], []>} : vector<8x16xbf16>, vector<16x64xbf16>, vector<8x64xf32> -> vector<8x64xf32>
    %409 = arith.addf %408, %406 : vector<8x64xf32>
    %410 = math.tanh %409 : vector<8x64xf32>
    %411 = arith.mulf %410, %23 : vector<8x64xf32>
    %412 = arith.addf %411, %26 : vector<8x64xf32>
    %413 = vector.extract_strided_slice %412 {offsets = [0, 16], sizes = [8, 16], strides = [1, 1]} : vector<8x64xf32> to vector<8x16xf32>
    %414 = arith.mulf %413, %382 : vector<8x16xf32>
    %415 = vector.extract_strided_slice %412 {offsets = [0, 0], sizes = [8, 16], strides = [1, 1]} : vector<8x64xf32> to vector<8x16xf32>
    %416 = vector.extract_strided_slice %412 {offsets = [0, 32], sizes = [8, 16], strides = [1, 1]} : vector<8x64xf32> to vector<8x16xf32>
    %417 = arith.mulf %415, %416 : vector<8x16xf32>
    %418 = arith.addf %414, %417 : vector<8x16xf32>
    %419 = vector.extract_strided_slice %412 {offsets = [0, 48], sizes = [8, 16], strides = [1, 1]} : vector<8x64xf32> to vector<8x16xf32>
    %420 = math.tanh %418 : vector<8x16xf32>
    %421 = arith.mulf %419, %420 : vector<8x16xf32>
    %422 = arith.index_cast %384 : i32 to index
    %c0_102 = arith.constant 0 : index
    %423 = vector.load %arg1[%422, %c0_102] : memref<64x1xf32, #tpu.memory_space<vmem>>, vector<8x1xf32>
    %cst_103 = arith.constant 0.000000e+00 : f32
    %424 = vector.broadcast %cst_103 : f32 to vector<8x1xf32>
    %425 = arith.cmpf ogt, %423, %424 : vector<8x1xf32>
    %426 = arith.index_cast %387 : i32 to index
    %c0_104 = arith.constant 0 : index
    %427 = vector.load %arg1[%426, %c0_104] : memref<64x1xf32, #tpu.memory_space<vmem>>, vector<8x1xf32>
    %cst_105 = arith.constant 0.000000e+00 : f32
    %428 = vector.broadcast %cst_105 : f32 to vector<8x1xf32>
    %429 = arith.cmpf ogt, %427, %428 : vector<8x1xf32>
    %cst_106 = arith.constant 0.000000e+00 : f32
    %430 = vector.shape_cast %425 : vector<8x1xi1> to vector<8x1xi1>
    %431 = vector.broadcast %430 : vector<8x1xi1> to vector<8x16xi1>
    %432 = vector.broadcast %cst_106 : f32 to vector<8x16xf32>
    %433 = arith.select %431, %404, %432 : vector<8x16xi1>, vector<8x16xf32>
    %434 = arith.index_cast %384 : i32 to index
    %c0_107 = arith.constant 0 : index
    %435 = vector.load %arg8[%434, %c0_107] : memref<64x32xf32, #tpu.memory_space<vmem>>, vector<8x16xf32>
    tpu.vector_store %arg8[%434, %c0_107], %433 {strides = array<i32>} : memref<64x32xf32, #tpu.memory_space<vmem>>, vector<8x16xf32>,
    %cst_108 = arith.constant 0.000000e+00 : f32
    %436 = vector.shape_cast %429 : vector<8x1xi1> to vector<8x1xi1>
    %437 = vector.broadcast %436 : vector<8x1xi1> to vector<8x16xi1>
    %438 = vector.broadcast %cst_108 : f32 to vector<8x16xf32>
    %439 = arith.select %437, %421, %438 : vector<8x16xi1>, vector<8x16xf32>
    %440 = arith.index_cast %387 : i32 to index
    %c16_109 = arith.constant 16 : index
    %441 = vector.load %arg8[%440, %c16_109] : memref<64x32xf32, #tpu.memory_space<vmem>>, vector<8x16xf32>
    tpu.vector_store %arg8[%440, %c16_109], %439 {strides = array<i32>} : memref<64x32xf32, #tpu.memory_space<vmem>>, vector<8x16xf32>,
    %442 = vector.shape_cast %425 : vector<8x1xi1> to vector<8x1xi1>
    %443 = vector.broadcast %442 : vector<8x1xi1> to vector<8x16xi1>
    %444 = arith.select %443, %404, %373 : vector<8x16xi1>, vector<8x16xf32>
    %445 = vector.shape_cast %425 : vector<8x1xi1> to vector<8x1xi1>
    %446 = vector.broadcast %445 : vector<8x1xi1> to vector<8x16xi1>
    %447 = arith.select %446, %401, %376 : vector<8x16xi1>, vector<8x16xf32>
    %448 = vector.shape_cast %429 : vector<8x1xi1> to vector<8x1xi1>
    %449 = vector.broadcast %448 : vector<8x1xi1> to vector<8x16xi1>
    %450 = arith.select %449, %421, %379 : vector<8x16xi1>, vector<8x16xf32>
    %451 = vector.shape_cast %429 : vector<8x1xi1> to vector<8x1xi1>
    %452 = vector.broadcast %451 : vector<8x1xi1> to vector<8x16xi1>
    %453 = arith.select %452, %418, %382 : vector<8x16xi1>, vector<8x16xf32>
    %c6_i32 = arith.constant 6 : i32
    %c8_i32_110 = arith.constant 8 : i32
    %454 = arith.muli %c6_i32, %c8_i32_110 : i32
    %455 = tpu.assume_multiple %454, 8 : i32
    %c7_i32_111 = arith.constant 7 : i32
    %456 = arith.subi %c7_i32_111, %c6_i32 : i32
    %c8_i32_112 = arith.constant 8 : i32
    %457 = arith.muli %456, %c8_i32_112 : i32
    %458 = tpu.assume_multiple %457, 8 : i32
    %459 = arith.index_cast %455 : i32 to index
    %c0_113 = arith.constant 0 : index
    %460 = vector.load %arg11[%459, %c0_113] : memref<64x64xf32, #tpu.memory_space<vmem>>, vector<8x64xf32>
    %461 = arith.truncf %444 : vector<8x16xf32> to vector<8x16xbf16>
    %cst_114 = arith.constant dense<0.000000e+00> : vector<8x64xf32>
    %462 = tpu.matmul %461, %13, %cst_114 {dimension_numbers = #tpu.dot_dimension_numbers<[1], [0], [0], [1], [0, 0, 1, 1], [], []>} : vector<8x16xbf16>, vector<16x64xbf16>, vector<8x64xf32> -> vector<8x64xf32>
    %463 = arith.addf %462, %460 : vector<8x64xf32>
    %464 = math.tanh %463 : vector<8x64xf32>
    %465 = arith.mulf %464, %23 : vector<8x64xf32>
    %466 = arith.addf %465, %26 : vector<8x64xf32>
    %467 = vector.extract_strided_slice %466 {offsets = [0, 16], sizes = [8, 16], strides = [1, 1]} : vector<8x64xf32> to vector<8x16xf32>
    %468 = arith.mulf %467, %447 : vector<8x16xf32>
    %469 = vector.extract_strided_slice %466 {offsets = [0, 0], sizes = [8, 16], strides = [1, 1]} : vector<8x64xf32> to vector<8x16xf32>
    %470 = vector.extract_strided_slice %466 {offsets = [0, 32], sizes = [8, 16], strides = [1, 1]} : vector<8x64xf32> to vector<8x16xf32>
    %471 = arith.mulf %469, %470 : vector<8x16xf32>
    %472 = arith.addf %468, %471 : vector<8x16xf32>
    %473 = vector.extract_strided_slice %466 {offsets = [0, 48], sizes = [8, 16], strides = [1, 1]} : vector<8x64xf32> to vector<8x16xf32>
    %474 = math.tanh %472 : vector<8x16xf32>
    %475 = arith.mulf %473, %474 : vector<8x16xf32>
    %476 = arith.index_cast %458 : i32 to index
    %c0_115 = arith.constant 0 : index
    %477 = vector.load %arg12[%476, %c0_115] : memref<64x64xf32, #tpu.memory_space<vmem>>, vector<8x64xf32>
    %478 = arith.truncf %450 : vector<8x16xf32> to vector<8x16xbf16>
    %cst_116 = arith.constant dense<0.000000e+00> : vector<8x64xf32>
    %479 = tpu.matmul %478, %14, %cst_116 {dimension_numbers = #tpu.dot_dimension_numbers<[1], [0], [0], [1], [0, 0, 1, 1], [], []>} : vector<8x16xbf16>, vector<16x64xbf16>, vector<8x64xf32> -> vector<8x64xf32>
    %480 = arith.addf %479, %477 : vector<8x64xf32>
    %481 = math.tanh %480 : vector<8x64xf32>
    %482 = arith.mulf %481, %23 : vector<8x64xf32>
    %483 = arith.addf %482, %26 : vector<8x64xf32>
    %484 = vector.extract_strided_slice %483 {offsets = [0, 16], sizes = [8, 16], strides = [1, 1]} : vector<8x64xf32> to vector<8x16xf32>
    %485 = arith.mulf %484, %453 : vector<8x16xf32>
    %486 = vector.extract_strided_slice %483 {offsets = [0, 0], sizes = [8, 16], strides = [1, 1]} : vector<8x64xf32> to vector<8x16xf32>
    %487 = vector.extract_strided_slice %483 {offsets = [0, 32], sizes = [8, 16], strides = [1, 1]} : vector<8x64xf32> to vector<8x16xf32>
    %488 = arith.mulf %486, %487 : vector<8x16xf32>
    %489 = arith.addf %485, %488 : vector<8x16xf32>
    %490 = vector.extract_strided_slice %483 {offsets = [0, 48], sizes = [8, 16], strides = [1, 1]} : vector<8x64xf32> to vector<8x16xf32>
    %491 = math.tanh %489 : vector<8x16xf32>
    %492 = arith.mulf %490, %491 : vector<8x16xf32>
    %493 = arith.index_cast %455 : i32 to index
    %c0_117 = arith.constant 0 : index
    %494 = vector.load %arg1[%493, %c0_117] : memref<64x1xf32, #tpu.memory_space<vmem>>, vector<8x1xf32>
    %cst_118 = arith.constant 0.000000e+00 : f32
    %495 = vector.broadcast %cst_118 : f32 to vector<8x1xf32>
    %496 = arith.cmpf ogt, %494, %495 : vector<8x1xf32>
    %497 = arith.index_cast %458 : i32 to index
    %c0_119 = arith.constant 0 : index
    %498 = vector.load %arg1[%497, %c0_119] : memref<64x1xf32, #tpu.memory_space<vmem>>, vector<8x1xf32>
    %cst_120 = arith.constant 0.000000e+00 : f32
    %499 = vector.broadcast %cst_120 : f32 to vector<8x1xf32>
    %500 = arith.cmpf ogt, %498, %499 : vector<8x1xf32>
    %cst_121 = arith.constant 0.000000e+00 : f32
    %501 = vector.shape_cast %496 : vector<8x1xi1> to vector<8x1xi1>
    %502 = vector.broadcast %501 : vector<8x1xi1> to vector<8x16xi1>
    %503 = vector.broadcast %cst_121 : f32 to vector<8x16xf32>
    %504 = arith.select %502, %475, %503 : vector<8x16xi1>, vector<8x16xf32>
    %505 = arith.index_cast %455 : i32 to index
    %c0_122 = arith.constant 0 : index
    %506 = vector.load %arg8[%505, %c0_122] : memref<64x32xf32, #tpu.memory_space<vmem>>, vector<8x16xf32>
    tpu.vector_store %arg8[%505, %c0_122], %504 {strides = array<i32>} : memref<64x32xf32, #tpu.memory_space<vmem>>, vector<8x16xf32>,
    %cst_123 = arith.constant 0.000000e+00 : f32
    %507 = vector.shape_cast %500 : vector<8x1xi1> to vector<8x1xi1>
    %508 = vector.broadcast %507 : vector<8x1xi1> to vector<8x16xi1>
    %509 = vector.broadcast %cst_123 : f32 to vector<8x16xf32>
    %510 = arith.select %508, %492, %509 : vector<8x16xi1>, vector<8x16xf32>
    %511 = arith.index_cast %458 : i32 to index
    %c16_124 = arith.constant 16 : index
    %512 = vector.load %arg8[%511, %c16_124] : memref<64x32xf32, #tpu.memory_space<vmem>>, vector<8x16xf32>
    tpu.vector_store %arg8[%511, %c16_124], %510 {strides = array<i32>} : memref<64x32xf32, #tpu.memory_space<vmem>>, vector<8x16xf32>,
    %513 = vector.shape_cast %496 : vector<8x1xi1> to vector<8x1xi1>
    %514 = vector.broadcast %513 : vector<8x1xi1> to vector<8x16xi1>
    %515 = arith.select %514, %475, %444 : vector<8x16xi1>, vector<8x16xf32>
    %516 = vector.shape_cast %496 : vector<8x1xi1> to vector<8x1xi1>
    %517 = vector.broadcast %516 : vector<8x1xi1> to vector<8x16xi1>
    %518 = arith.select %517, %472, %447 : vector<8x16xi1>, vector<8x16xf32>
    %519 = vector.shape_cast %500 : vector<8x1xi1> to vector<8x1xi1>
    %520 = vector.broadcast %519 : vector<8x1xi1> to vector<8x16xi1>
    %521 = arith.select %520, %492, %450 : vector<8x16xi1>, vector<8x16xf32>
    %522 = vector.shape_cast %500 : vector<8x1xi1> to vector<8x1xi1>
    %523 = vector.broadcast %522 : vector<8x1xi1> to vector<8x16xi1>
    %524 = arith.select %523, %489, %453 : vector<8x16xi1>, vector<8x16xf32>
    %c7_i32_125 = arith.constant 7 : i32
    %c8_i32_126 = arith.constant 8 : i32
    %525 = arith.muli %c7_i32_125, %c8_i32_126 : i32
    %526 = tpu.assume_multiple %525, 8 : i32
    %c7_i32_127 = arith.constant 7 : i32
    %527 = arith.subi %c7_i32_127, %c7_i32_125 : i32
    %c8_i32_128 = arith.constant 8 : i32
    %528 = arith.muli %527, %c8_i32_128 : i32
    %529 = tpu.assume_multiple %528, 8 : i32
    %530 = arith.index_cast %526 : i32 to index
    %c0_129 = arith.constant 0 : index
    %531 = vector.load %arg11[%530, %c0_129] : memref<64x64xf32, #tpu.memory_space<vmem>>, vector<8x64xf32>
    %532 = arith.truncf %515 : vector<8x16xf32> to vector<8x16xbf16>
    %cst_130 = arith.constant dense<0.000000e+00> : vector<8x64xf32>
    %533 = tpu.matmul %532, %13, %cst_130 {dimension_numbers = #tpu.dot_dimension_numbers<[1], [0], [0], [1], [0, 0, 1, 1], [], []>} : vector<8x16xbf16>, vector<16x64xbf16>, vector<8x64xf32> -> vector<8x64xf32>
    %534 = arith.addf %533, %531 : vector<8x64xf32>
    %535 = math.tanh %534 : vector<8x64xf32>
    %536 = arith.mulf %535, %23 : vector<8x64xf32>
    %537 = arith.addf %536, %26 : vector<8x64xf32>
    %538 = vector.extract_strided_slice %537 {offsets = [0, 16], sizes = [8, 16], strides = [1, 1]} : vector<8x64xf32> to vector<8x16xf32>
    %539 = arith.mulf %538, %518 : vector<8x16xf32>
    %540 = vector.extract_strided_slice %537 {offsets = [0, 0], sizes = [8, 16], strides = [1, 1]} : vector<8x64xf32> to vector<8x16xf32>
    %541 = vector.extract_strided_slice %537 {offsets = [0, 32], sizes = [8, 16], strides = [1, 1]} : vector<8x64xf32> to vector<8x16xf32>
    %542 = arith.mulf %540, %541 : vector<8x16xf32>
    %543 = arith.addf %539, %542 : vector<8x16xf32>
    %544 = vector.extract_strided_slice %537 {offsets = [0, 48], sizes = [8, 16], strides = [1, 1]} : vector<8x64xf32> to vector<8x16xf32>
    %545 = math.tanh %543 : vector<8x16xf32>
    %546 = arith.mulf %544, %545 : vector<8x16xf32>
    %547 = arith.index_cast %529 : i32 to index
    %c0_131 = arith.constant 0 : index
    %548 = vector.load %arg12[%547, %c0_131] : memref<64x64xf32, #tpu.memory_space<vmem>>, vector<8x64xf32>
    %549 = arith.truncf %521 : vector<8x16xf32> to vector<8x16xbf16>
    %cst_132 = arith.constant dense<0.000000e+00> : vector<8x64xf32>
    %550 = tpu.matmul %549, %14, %cst_132 {dimension_numbers = #tpu.dot_dimension_numbers<[1], [0], [0], [1], [0, 0, 1, 1], [], []>} : vector<8x16xbf16>, vector<16x64xbf16>, vector<8x64xf32> -> vector<8x64xf32>
    %551 = arith.addf %550, %548 : vector<8x64xf32>
    %552 = math.tanh %551 : vector<8x64xf32>
    %553 = arith.mulf %552, %23 : vector<8x64xf32>
    %554 = arith.addf %553, %26 : vector<8x64xf32>
    %555 = vector.extract_strided_slice %554 {offsets = [0, 16], sizes = [8, 16], strides = [1, 1]} : vector<8x64xf32> to vector<8x16xf32>
    %556 = arith.mulf %555, %524 : vector<8x16xf32>
    %557 = vector.extract_strided_slice %554 {offsets = [0, 0], sizes = [8, 16], strides = [1, 1]} : vector<8x64xf32> to vector<8x16xf32>
    %558 = vector.extract_strided_slice %554 {offsets = [0, 32], sizes = [8, 16], strides = [1, 1]} : vector<8x64xf32> to vector<8x16xf32>
    %559 = arith.mulf %557, %558 : vector<8x16xf32>
    %560 = arith.addf %556, %559 : vector<8x16xf32>
    %561 = vector.extract_strided_slice %554 {offsets = [0, 48], sizes = [8, 16], strides = [1, 1]} : vector<8x64xf32> to vector<8x16xf32>
    %562 = math.tanh %560 : vector<8x16xf32>
    %563 = arith.mulf %561, %562 : vector<8x16xf32>
    %564 = arith.index_cast %526 : i32 to index
    %c0_133 = arith.constant 0 : index
    %565 = vector.load %arg1[%564, %c0_133] : memref<64x1xf32, #tpu.memory_space<vmem>>, vector<8x1xf32>
    %cst_134 = arith.constant 0.000000e+00 : f32
    %566 = vector.broadcast %cst_134 : f32 to vector<8x1xf32>
    %567 = arith.cmpf ogt, %565, %566 : vector<8x1xf32>
    %568 = arith.index_cast %529 : i32 to index
    %c0_135 = arith.constant 0 : index
    %569 = vector.load %arg1[%568, %c0_135] : memref<64x1xf32, #tpu.memory_space<vmem>>, vector<8x1xf32>
    %cst_136 = arith.constant 0.000000e+00 : f32
    %570 = vector.broadcast %cst_136 : f32 to vector<8x1xf32>
    %571 = arith.cmpf ogt, %569, %570 : vector<8x1xf32>
    %cst_137 = arith.constant 0.000000e+00 : f32
    %572 = vector.shape_cast %567 : vector<8x1xi1> to vector<8x1xi1>
    %573 = vector.broadcast %572 : vector<8x1xi1> to vector<8x16xi1>
    %574 = vector.broadcast %cst_137 : f32 to vector<8x16xf32>
    %575 = arith.select %573, %546, %574 : vector<8x16xi1>, vector<8x16xf32>
    %576 = arith.index_cast %526 : i32 to index
    %c0_138 = arith.constant 0 : index
    %577 = vector.load %arg8[%576, %c0_138] : memref<64x32xf32, #tpu.memory_space<vmem>>, vector<8x16xf32>
    tpu.vector_store %arg8[%576, %c0_138], %575 {strides = array<i32>} : memref<64x32xf32, #tpu.memory_space<vmem>>, vector<8x16xf32>,
    %cst_139 = arith.constant 0.000000e+00 : f32
    %578 = vector.shape_cast %571 : vector<8x1xi1> to vector<8x1xi1>
    %579 = vector.broadcast %578 : vector<8x1xi1> to vector<8x16xi1>
    %580 = vector.broadcast %cst_139 : f32 to vector<8x16xf32>
    %581 = arith.select %579, %563, %580 : vector<8x16xi1>, vector<8x16xf32>
    %582 = arith.index_cast %529 : i32 to index
    %c16_140 = arith.constant 16 : index
    %583 = vector.load %arg8[%582, %c16_140] : memref<64x32xf32, #tpu.memory_space<vmem>>, vector<8x16xf32>
    tpu.vector_store %arg8[%582, %c16_140], %581 {strides = array<i32>} : memref<64x32xf32, #tpu.memory_space<vmem>>, vector<8x16xf32>,
    %584 = vector.shape_cast %567 : vector<8x1xi1> to vector<8x1xi1>
    %585 = vector.broadcast %584 : vector<8x1xi1> to vector<8x16xi1>
    %586 = arith.select %585, %546, %515 : vector<8x16xi1>, vector<8x16xf32>
    %587 = vector.shape_cast %567 : vector<8x1xi1> to vector<8x1xi1>
    %588 = vector.broadcast %587 : vector<8x1xi1> to vector<8x16xi1>
    %589 = arith.select %588, %543, %518 : vector<8x16xi1>, vector<8x16xf32>
    %590 = vector.shape_cast %571 : vector<8x1xi1> to vector<8x1xi1>
    %591 = vector.broadcast %590 : vector<8x1xi1> to vector<8x16xi1>
    %592 = arith.select %591, %563, %521 : vector<8x16xi1>, vector<8x16xf32>
    %593 = vector.shape_cast %571 : vector<8x1xi1> to vector<8x1xi1>
    %594 = vector.broadcast %593 : vector<8x1xi1> to vector<8x16xi1>
    %595 = arith.select %594, %560, %524 : vector<8x16xi1>, vector<8x16xf32>
    %c8_i32_141 = arith.constant 8 : i32
    %c0_142 = arith.constant 0 : index
    %c0_143 = arith.constant 0 : index
    %c0_144 = arith.constant 0 : index
    %596 = vector.load %arg9[%c0_142, %c0_143, %c0_144] : memref<1x8x32xf32, #tpu.memory_space<vmem>>, vector<1x8x16xf32>
    %597 = vector.shape_cast %596 : vector<1x8x16xf32> to vector<8x16xf32>
    %598 = vector.shape_cast %586 : vector<8x16xf32> to vector<1x8x16xf32>
    tpu.vector_store %arg9[%c0_142, %c0_143, %c0_144], %598 {strides = array<i32>} : memref<1x8x32xf32, #tpu.memory_space<vmem>>, vector<1x8x16xf32>,
    %c0_145 = arith.constant 0 : index
    %c0_146 = arith.constant 0 : index
    %c16_147 = arith.constant 16 : index
    %599 = vector.load %arg9[%c0_145, %c0_146, %c16_147] : memref<1x8x32xf32, #tpu.memory_space<vmem>>, vector<1x8x16xf32>
    %600 = vector.shape_cast %599 : vector<1x8x16xf32> to vector<8x16xf32>
    %601 = vector.shape_cast %592 : vector<8x16xf32> to vector<1x8x16xf32>
    tpu.vector_store %arg9[%c0_145, %c0_146, %c16_147], %601 {strides = array<i32>} : memref<1x8x32xf32, #tpu.memory_space<vmem>>, vector<1x8x16xf32>,
    %c0_148 = arith.constant 0 : index
    %c0_149 = arith.constant 0 : index
    %c0_150 = arith.constant 0 : index
    %602 = vector.load %arg10[%c0_148, %c0_149, %c0_150] : memref<1x8x32xf32, #tpu.memory_space<vmem>>, vector<1x8x16xf32>
    %603 = vector.shape_cast %602 : vector<1x8x16xf32> to vector<8x16xf32>
    %604 = vector.shape_cast %589 : vector<8x16xf32> to vector<1x8x16xf32>
    tpu.vector_store %arg10[%c0_148, %c0_149, %c0_150], %604 {strides = array<i32>} : memref<1x8x32xf32, #tpu.memory_space<vmem>>, vector<1x8x16xf32>,
    %c0_151 = arith.constant 0 : index
    %c0_152 = arith.constant 0 : index
    %c16_153 = arith.constant 16 : index
    %605 = vector.load %arg10[%c0_151, %c0_152, %c16_153] : memref<1x8x32xf32, #tpu.memory_space<vmem>>, vector<1x8x16xf32>
    %606 = vector.shape_cast %605 : vector<1x8x16xf32> to vector<8x16xf32>
    %607 = vector.shape_cast %595 : vector<8x16xf32> to vector<1x8x16xf32>
    tpu.vector_store %arg10[%c0_151, %c0_152, %c16_153], %607 {strides = array<i32>} : memref<1x8x32xf32, #tpu.memory_space<vmem>>, vector<1x8x16xf32>,
    return
  }
}

</mosaic_0001>

<llo_original>
// kernel: encoder_forward.1
$region0: #{encoder_forward.1}
  #allocation0 [shape = 'u32[]', space=smem, size = 0x4, offset = 0x4, fixed_abs, tag = 'smem constant byte address 0x4 - core index']
  #allocation1 [shape = 'u32[144,128]{1,0:T(1,128)}', space=vmem, size = 0x12000, scoped, tag = 'internal scratch']
  #allocation2 [shape = 'f32[64,64]{1,0:T(8,128)}', space=vmem, size = 0x8000, scoped, tag = 'scratch operand']
  #allocation3 [shape = 'f32[64,64]{1,0:T(8,128)}', space=vmem, size = 0x8000, scoped, tag = 'scratch operand']
  %s0 = inlined_call_operand.vmem [shape: bf16[64,32], index: 0, kind: input, shape index: {}]
  %s1 = inlined_call_operand.vmem [shape: f32[64,1], index: 1, kind: input, shape index: {}]
  %s2 = inlined_call_operand.vmem [shape: bf16[32,64], index: 2, kind: input, shape index: {}]
  %s3 = inlined_call_operand.vmem [shape: bf16[32,64], index: 3, kind: input, shape index: {}]
  %s4 = inlined_call_operand.vmem [shape: bf16[16,64], index: 4, kind: input, shape index: {}]
  %s5 = inlined_call_operand.vmem [shape: bf16[16,64], index: 5, kind: input, shape index: {}]
  %s6 = inlined_call_operand.vmem [shape: f32[1,64], index: 6, kind: input, shape index: {}]
  %s7 = inlined_call_operand.vmem [shape: f32[1,64], index: 7, kind: input, shape index: {}]
  %s8 = inlined_call_operand.vmem [shape: f32[64,32], index: 8, kind: output, shape index: {0}]
  %s9 = inlined_call_operand.vmem [shape: f32[1,8,32], index: 9, kind: output, shape index: {1}]
  %s10 = inlined_call_operand.vmem [shape: f32[1,8,32], index: 10, kind: output, shape index: {2}]
  %11 = xla_tuple %s8, %s9, %s10
  %s12 = sld [smem:[#allocation0]]
  $region58: #{encoder_forward.1} parent=0
    _
  %s14 = ssub.s32 1, %s12
  %s15 = scalar_select 0, %s14, %s12
  // Predicated region
  $region2: #{encoder_forward.1} parent=0 // pred_check
    _
  $region3: #{encoder_forward.1} parent=0 // pred_check_branch
    %17 = sbr.rel (0) target = $region5
  $region4: #{encoder_forward.1} parent=0 // pred_region
    _
  $region5: #{encoder_forward.1} parent=0 // pred_fallthru
    _
  // Predicated region
  $region6: #{encoder_forward.1} parent=0 // pred_check
    _
  $region7: #{encoder_forward.1} parent=0 // pred_check_branch
    %19 = sbr.rel (0) target = $region9
  $region8: #{encoder_forward.1} parent=0 // pred_region
    _
  $region9: #{encoder_forward.1} parent=0 // pred_fallthru
    _
  // Predicated region
  $region10: #{encoder_forward.1} parent=0 // pred_check
    _
  $region11: #{encoder_forward.1} parent=0 // pred_check_branch
    %21 = sbr.rel (0) target = $region13
  $region12: #{encoder_forward.1} parent=0 // pred_region
    _
  $region13: #{encoder_forward.1} parent=0 // pred_fallthru
    _
  // Predicated region
  $region14: #{encoder_forward.1} parent=0 // pred_check
    _
  $region15: #{encoder_forward.1} parent=0 // pred_check_branch
    %23 = sbr.rel (0) target = $region17
  $region16: #{encoder_forward.1} parent=0 // pred_region
    _
  $region17: #{encoder_forward.1} parent=0 // pred_fallthru
    _
  // Predicated region
  $region18: #{encoder_forward.1} parent=0 // pred_check
    _
  $region19: #{encoder_forward.1} parent=0 // pred_check_branch
    %25 = sbr.rel (0) target = $region21
  $region20: #{encoder_forward.1} parent=0 // pred_region
    _
  $region21: #{encoder_forward.1} parent=0 // pred_fallthru
    _
  // Predicated region
  $region22: #{encoder_forward.1} parent=0 // pred_check
    _
  $region23: #{encoder_forward.1} parent=0 // pred_check_branch
    %27 = sbr.rel (0) target = $region25
  $region24: #{encoder_forward.1} parent=0 // pred_region
    _
  $region25: #{encoder_forward.1} parent=0 // pred_fallthru
    _
  // Predicated region
  $region26: #{encoder_forward.1} parent=0 // pred_check
    _
  $region27: #{encoder_forward.1} parent=0 // pred_check_branch
    %29 = sbr.rel (0) target = $region29
  $region28: #{encoder_forward.1} parent=0 // pred_region
    _
  $region29: #{encoder_forward.1} parent=0 // pred_fallthru
    _
  // Predicated region
  $region30: #{encoder_forward.1} parent=0 // pred_check
    _
  $region31: #{encoder_forward.1} parent=0 // pred_check_branch
    %31 = sbr.rel (0) target = $region33
  $region32: #{encoder_forward.1} parent=0 // pred_region
    _
  $region33: #{encoder_forward.1} parent=0 // pred_fallthru
    _
  %v33 = vld [vmem:[%s0] sm:$0xf]
  %v34 = vld [vmem:[%s0 + $0x4] sm:$0xf]
  %v35 = vld [vmem:[%s0 + $0x8] sm:$0xf]
  %v36 = vld [vmem:[%s0 + $0xc] sm:$0xf]
  %v37 = vld [vmem:[%s0 + $0x10] sm:$0xf]
  %v38 = vld [vmem:[%s0 + $0x14] sm:$0xf]
  %v39 = vld [vmem:[%s0 + $0x18] sm:$0xf]
  %v40 = vld [vmem:[%s0 + $0x1c] sm:$0xf]
  %v41 = vld [vmem:[%s2] sm:$0xf]
  %v42 = vld [vmem:[%s2 + $0x4] sm:$0xf]
  %v43 = vld [vmem:[%s2 + $0x8] sm:$0xf]
  %v44 = vld [vmem:[%s2 + $0xc] sm:$0xf]
  %v45 = vld [vmem:[%s6] sm:$0x1]
  %v47 = vlaneseq
  %v48 = vshrl.u32 %v47, 7
  %v49 = vsub.s32 0, %v48
  %v50 = vrot.slane %v45, %v49
  %v60 = vunpack.c.l.b16 %v33
  %v61 = vunpack.c.l.b16 %v34
  %v62 = vunpack.c.l.b16 %v35
  %v63 = vunpack.c.l.b16 %v36
  %v64 = vunpack.c.l.b16 %v37
  %v65 = vunpack.c.l.b16 %v38
  %v66 = vunpack.c.l.b16 %v39
  %v67 = vunpack.c.l.b16 %v40
  %v68 = vpack.c.b16 %v61, %v60
  %v69 = vpack.c.b16 %v63, %v62
  %v70 = vpack.c.b16 %v65, %v64
  %v71 = vpack.c.b16 %v67, %v66
  %v76 = vunpack.c.l.b16 %v41
  %v77 = vunpack.c.l.b16 %v42
  %v78 = vunpack.c.l.b16 %v43
  %v79 = vunpack.c.l.b16 %v44
  %v80 = vpack.c.b16 %v77, %v76
  %v81 = vpack.c.b16 %v79, %v78
  %vm84 = vcmask 261120
  %v86 = vsel %vm84, %v68, 0
  %v89 = vsel %vm84, %v69, 0
  %v92 = vsel %vm84, %v70, 0
  %v95 = vsel %vm84, %v71, 0
  %97 = vmatprep.subr.bf16.mxu0 0
  %98 = vmatpush1.bf16.msra.mxu0 %v80
  %99 = vmatprep.subr.bf16.mxu0 0
  %100 = vmatpush1.bf16.msra.mxu0 %v81
  %101 = vmatprep.subr.bf16.mxu0 0
  %102 = vmatpush1.bf16.msra.mxu0 0
  %103 = vmatprep.subr.bf16.mxu0 0
  %104 = vmatpush1.bf16.msra.mxu0 0
  %105 = vmatprep.subr.bf16.mxu0 0
  %106 = vmatpush1.bf16.msra.mxu0 0
  %107 = vmatprep.subr.bf16.mxu0 0
  %108 = vmatpush1.bf16.msra.mxu0 0
  %109 = vmatprep.subr.bf16.mxu0 0
  %110 = vmatpush1.bf16.msra.mxu0 0
  %111 = vmatprep.subr.bf16.mxu0 0
  %112 = vmatpush1.bf16.msra.mxu0 0
  %113 = vmatprep.subr.bf16.mxu0 0
  %114 = vmatpush1.bf16.msra.mxu0 0
  %115 = vmatprep.subr.bf16.mxu0 0
  %116 = vmatpush1.bf16.msra.mxu0 0
  %117 = vmatprep.subr.bf16.mxu0 0
  %118 = vmatpush1.bf16.msra.mxu0 0
  %119 = vmatprep.subr.bf16.mxu0 0
  %120 = vmatpush1.bf16.msra.mxu0 0
  %121 = vmatprep.subr.bf16.mxu0 0
  %122 = vmatpush1.bf16.msra.mxu0 0
  %123 = vmatprep.subr.bf16.mxu0 0
  %124 = vmatpush1.bf16.msra.mxu0 0
  %125 = vmatprep.subr.bf16.mxu0 0
  %126 = vmatpush1.bf16.msra.mxu0 0
  %127 = vmatprep.subr.bf16.mxu0 0
  %128 = vmatpush1.bf16.msra.mxu0 0
  %129 = vmatprep.mubr.bf16.mxu0 0
  %130 = vmatmul.mubr.bf16.gmra.mrb[0].mxu0 %v86
  %v131 = vpop.f32.mrb[0].mxu0
  %v132 = vadd.f32 %v50, %v131
  %v133 = vpop.f32.mrb[0].mxu0
  %v134 = vpop.f32.mrb[0].mxu0
  %v135 = vadd.f32 %v50, %v134
  %v136 = vpop.f32.mrb[0].mxu0
  %137 = vmatprep.mubr.bf16.mxu0 0
  %138 = vmatmul.mubr.bf16.gmra.mrb[0].mxu0 %v89
  %v139 = vpop.f32.mrb[0].mxu0
  %v140 = vadd.f32 %v50, %v139
  %v141 = vpop.f32.mrb[0].mxu0
  %v142 = vpop.f32.mrb[0].mxu0
  %v143 = vadd.f32 %v50, %v142
  %v144 = vpop.f32.mrb[0].mxu0
  %145 = vmatprep.mubr.bf16.mxu0 0
  %146 = vmatmul.mubr.bf16.gmra.mrb[0].mxu0 %v92
  %v147 = vpop.f32.mrb[0].mxu0
  %v148 = vadd.f32 %v50, %v147
  %v149 = vpop.f32.mrb[0].mxu0
  %v150 = vpop.f32.mrb[0].mxu0
  %v151 = vadd.f32 %v50, %v150
  %v152 = vpop.f32.mrb[0].mxu0
  %153 = vmatprep.mubr.bf16.mxu0 0
  %154 = vmatmul.mubr.bf16.gmra.mrb[0].mxu0 %v95
  %v155 = vpop.f32.mrb[0].mxu0
  %v156 = vadd.f32 %v50, %v155
  %v157 = vpop.f32.mrb[0].mxu0
  %v158 = vpop.f32.mrb[0].mxu0
  %v159 = vadd.f32 %v50, %v158
  %v160 = vpop.f32.mrb[0].mxu0
  %161 = vdwg.mxu0
  %vm162 = vcmask 523264
  %163 = vst.msk [vmem:[#allocation2] sm:$0xff] %vm162, %v132
  %164 = vst.msk [vmem:[#allocation2 + $0x8] sm:$0xff] %vm162, %v135
  %165 = vst.msk [vmem:[#allocation2 + $0x10] sm:$0xff] %vm162, %v140
  %166 = vst.msk [vmem:[#allocation2 + $0x18] sm:$0xff] %vm162, %v143
  %167 = vst.msk [vmem:[#allocation2 + $0x20] sm:$0xff] %vm162, %v148
  %168 = vst.msk [vmem:[#allocation2 + $0x28] sm:$0xff] %vm162, %v151
  %169 = vst.msk [vmem:[#allocation2 + $0x30] sm:$0xff] %vm162, %v156
  %170 = vst.msk [vmem:[#allocation2 + $0x38] sm:$0xff] %vm162, %v159
  %v171 = vld [vmem:[%s3] sm:$0xf]
  %v172 = vld [vmem:[%s3 + $0x4] sm:$0xf]
  %v173 = vld [vmem:[%s3 + $0x8] sm:$0xf]
  %v174 = vld [vmem:[%s3 + $0xc] sm:$0xf]
  %v175 = vld [vmem:[%s7] sm:$0x1]
  %v177 = vlaneseq
  %v178 = vshrl.u32 %v177, 7
  %v179 = vsub.s32 0, %v178
  %v180 = vrot.slane %v175, %v179
  %v186 = vunpack.c.l.b16 %v171
  %v187 = vunpack.c.l.b16 %v172
  %v188 = vunpack.c.l.b16 %v173
  %v189 = vunpack.c.l.b16 %v174
  %v190 = vpack.c.b16 %v187, %v186
  %v191 = vpack.c.b16 %v189, %v188
  %194 = vmatprep.subr.bf16.mxu0 0
  %195 = vmatpush1.bf16.msra.mxu0 %v190
  %196 = vmatprep.subr.bf16.mxu0 0
  %197 = vmatpush1.bf16.msra.mxu0 %v191
  %198 = vmatprep.subr.bf16.mxu0 0
  %199 = vmatpush1.bf16.msra.mxu0 0
  %200 = vmatprep.subr.bf16.mxu0 0
  %201 = vmatpush1.bf16.msra.mxu0 0
  %202 = vmatprep.subr.bf16.mxu0 0
  %203 = vmatpush1.bf16.msra.mxu0 0
  %204 = vmatprep.subr.bf16.mxu0 0
  %205 = vmatpush1.bf16.msra.mxu0 0
  %206 = vmatprep.subr.bf16.mxu0 0
  %207 = vmatpush1.bf16.msra.mxu0 0
  %208 = vmatprep.subr.bf16.mxu0 0
  %209 = vmatpush1.bf16.msra.mxu0 0
  %210 = vmatprep.subr.bf16.mxu0 0
  %211 = vmatpush1.bf16.msra.mxu0 0
  %212 = vmatprep.subr.bf16.mxu0 0
  %213 = vmatpush1.bf16.msra.mxu0 0
  %214 = vmatprep.subr.bf16.mxu0 0
  %215 = vmatpush1.bf16.msra.mxu0 0
  %216 = vmatprep.subr.bf16.mxu0 0
  %217 = vmatpush1.bf16.msra.mxu0 0
  %218 = vmatprep.subr.bf16.mxu0 0
  %219 = vmatpush1.bf16.msra.mxu0 0
  %220 = vmatprep.subr.bf16.mxu0 0
  %221 = vmatpush1.bf16.msra.mxu0 0
  %222 = vmatprep.subr.bf16.mxu0 0
  %223 = vmatpush1.bf16.msra.mxu0 0
  %224 = vmatprep.subr.bf16.mxu0 0
  %225 = vmatpush1.bf16.msra.mxu0 0
  %226 = vmatprep.mubr.bf16.mxu0 0
  %227 = vmatmul.mubr.bf16.gmra.mrb[0].mxu0 %v86
  %v228 = vpop.f32.mrb[0].mxu0
  %v229 = vadd.f32 %v180, %v228
  %v230 = vpop.f32.mrb[0].mxu0
  %v231 = vpop.f32.mrb[0].mxu0
  %v232 = vadd.f32 %v180, %v231
  %v233 = vpop.f32.mrb[0].mxu0
  %234 = vmatprep.mubr.bf16.mxu0 0
  %235 = vmatmul.mubr.bf16.gmra.mrb[0].mxu0 %v89
  %v236 = vpop.f32.mrb[0].mxu0
  %v237 = vadd.f32 %v180, %v236
  %v238 = vpop.f32.mrb[0].mxu0
  %v239 = vpop.f32.mrb[0].mxu0
  %v240 = vadd.f32 %v180, %v239
  %v241 = vpop.f32.mrb[0].mxu0
  %242 = vmatprep.mubr.bf16.mxu0 0
  %243 = vmatmul.mubr.bf16.gmra.mrb[0].mxu0 %v92
  %v244 = vpop.f32.mrb[0].mxu0
  %v245 = vadd.f32 %v180, %v244
  %v246 = vpop.f32.mrb[0].mxu0
  %v247 = vpop.f32.mrb[0].mxu0
  %v248 = vadd.f32 %v180, %v247
  %v249 = vpop.f32.mrb[0].mxu0
  %250 = vmatprep.mubr.bf16.mxu0 0
  %251 = vmatmul.mubr.bf16.gmra.mrb[0].mxu0 %v95
  %v252 = vpop.f32.mrb[0].mxu0
  %v253 = vadd.f32 %v180, %v252
  %v254 = vpop.f32.mrb[0].mxu0
  %v255 = vpop.f32.mrb[0].mxu0
  %v256 = vadd.f32 %v180, %v255
  %v257 = vpop.f32.mrb[0].mxu0
  %258 = vdwg.mxu0
  %259 = vst.msk [vmem:[#allocation3] sm:$0xff] %vm162, %v229
  %260 = vst.msk [vmem:[#allocation3 + $0x8] sm:$0xff] %vm162, %v232
  %261 = vst.msk [vmem:[#allocation3 + $0x10] sm:$0xff] %vm162, %v237
  %262 = vst.msk [vmem:[#allocation3 + $0x18] sm:$0xff] %vm162, %v240
  %263 = vst.msk [vmem:[#allocation3 + $0x20] sm:$0xff] %vm162, %v245
  %264 = vst.msk [vmem:[#allocation3 + $0x28] sm:$0xff] %vm162, %v248
  %265 = vst.msk [vmem:[#allocation3 + $0x30] sm:$0xff] %vm162, %v253
  %266 = vst.msk [vmem:[#allocation3 + $0x38] sm:$0xff] %vm162, %v256
  %v267 = vld [vmem:[%s4] sm:$0xf]
  %v268 = vld [vmem:[%s4 + $0x4] sm:$0xf]
  %v269 = vld [vmem:[%s5] sm:$0xf]
  %v270 = vld [vmem:[%s5 + $0x4] sm:$0xf]
  %v271 = vlaneseq
  %v272 = vand.u32 %v271, 127
  %vm273 = vcmp.ge.s32.totalorder %v272, 32
  %vm274 = vcmp.lt.s32.totalorder %v272, 48
  %vm275 = vmand %vm273, %vm274
  %v276 = vsel %vm275, 1.0, 0.5
  %v277 = vsel %vm275, 0.0, 0.5
  %v278 = vld [vmem:[#allocation2] sm:$0xff]
  %v281 = vunpack.c.l.b16 %v267
  %v282 = vunpack.c.l.b16 %v268
  %v283 = vpack.c.b16 %v282, %v281
  %vm285 = vcmask 130048
  %v287 = vsel %vm285, 0, 0
  %289 = vmatprep.subr.bf16.mxu0 0
  %290 = vmatpush1.bf16.msra.mxu0 %v283
  %291 = vmatprep.subr.bf16.mxu0 0
  %292 = vmatpush1.bf16.msra.mxu0 0
  %293 = vmatprep.subr.bf16.mxu0 0
  %294 = vmatpush1.bf16.msra.mxu0 0
  %295 = vmatprep.subr.bf16.mxu0 0
  %296 = vmatpush1.bf16.msra.mxu0 0
  %297 = vmatprep.subr.bf16.mxu0 0
  %298 = vmatpush1.bf16.msra.mxu0 0
  %299 = vmatprep.subr.bf16.mxu0 0
  %300 = vmatpush1.bf16.msra.mxu0 0
  %301 = vmatprep.subr.bf16.mxu0 0
  %302 = vmatpush1.bf16.msra.mxu0 0
  %303 = vmatprep.subr.bf16.mxu0 0
  %304 = vmatpush1.bf16.msra.mxu0 0
  %305 = vmatprep.subr.bf16.mxu0 0
  %306 = vmatpush1.bf16.msra.mxu0 0
  %307 = vmatprep.subr.bf16.mxu0 0
  %308 = vmatpush1.bf16.msra.mxu0 0
  %309 = vmatprep.subr.bf16.mxu0 0
  %310 = vmatpush1.bf16.msra.mxu0 0
  %311 = vmatprep.subr.bf16.mxu0 0
  %312 = vmatpush1.bf16.msra.mxu0 0
  %313 = vmatprep.subr.bf16.mxu0 0
  %314 = vmatpush1.bf16.msra.mxu0 0
  %315 = vmatprep.subr.bf16.mxu0 0
  %316 = vmatpush1.bf16.msra.mxu0 0
  %317 = vmatprep.subr.bf16.mxu0 0
  %318 = vmatpush1.bf16.msra.mxu0 0
  %319 = vmatprep.subr.bf16.mxu0 0
  %320 = vmatpush1.bf16.msra.mxu0 0
  %321 = vmatprep.mubr.bf16.mxu0 0
  %322 = vmatmul.mubr.bf16.gmra.mrb[0].mxu0 %v287
  %v323 = vpop.f32.mrb[0].mxu0
  %v324 = vadd.f32 %v278, %v323
  %v325 = vpop.f32.mrb[0].mxu0
  %v326 = vpop.f32.mrb[0].mxu0
  %v327 = vpop.f32.mrb[0].mxu0
  %328 = vdwg.mxu0
  %v329 = vtanh.pop %v324
  %v330 = vmul.f32 %v329, %v276
  %v331 = vadd.f32 %v330, %v277
  %v332 = vmul.f32 %v331, 0.0
  %334 = vrot.lane.b32.xlu0 %v331, 96
  %v335 = vpop.permute.xlu0 %334
  %v337 = vmul.f32 %v331, %v335
  %339 = vrot.lane.b32.xlu0 %v337, 16
  %v340 = vpop.permute.xlu0 %339
  %v342 = vadd.f32 %v332, %v340
  %v343 = vtanh.pop %v342
  %345 = vrot.lane.b32.xlu0 %v343, 32
  %v346 = vpop.permute.xlu0 %345
  %v348 = vmul.f32 %v331, %v346
  %s349 = scalar_lea.vmem [#allocation3], 56
  %v350 = vld [vmem:[%s349] sm:$0xff]
  %v353 = vunpack.c.l.b16 %v269
  %v354 = vunpack.c.l.b16 %v270
  %v355 = vpack.c.b16 %v354, %v353
  %357 = vmatprep.subr.bf16.mxu0 0
  %358 = vmatpush1.bf16.msra.mxu0 %v355
  %359 = vmatprep.subr.bf16.mxu0 0
  %360 = vmatpush1.bf16.msra.mxu0 0
  %361 = vmatprep.subr.bf16.mxu0 0
  %362 = vmatpush1.bf16.msra.mxu0 0
  %363 = vmatprep.subr.bf16.mxu0 0
  %364 = vmatpush1.bf16.msra.mxu0 0
  %365 = vmatprep.subr.bf16.mxu0 0
  %366 = vmatpush1.bf16.msra.mxu0 0
  %367 = vmatprep.subr.bf16.mxu0 0
  %368 = vmatpush1.bf16.msra.mxu0 0
  %369 = vmatprep.subr.bf16.mxu0 0
  %370 = vmatpush1.bf16.msra.mxu0 0
  %371 = vmatprep.subr.bf16.mxu0 0
  %372 = vmatpush1.bf16.msra.mxu0 0
  %373 = vmatprep.subr.bf16.mxu0 0
  %374 = vmatpush1.bf16.msra.mxu0 0
  %375 = vmatprep.subr.bf16.mxu0 0
  %376 = vmatpush1.bf16.msra.mxu0 0
  %377 = vmatprep.subr.bf16.mxu0 0
  %378 = vmatpush1.bf16.msra.mxu0 0
  %379 = vmatprep.subr.bf16.mxu0 0
  %380 = vmatpush1.bf16.msra.mxu0 0
  %381 = vmatprep.subr.bf16.mxu0 0
  %382 = vmatpush1.bf16.msra.mxu0 0
  %383 = vmatprep.subr.bf16.mxu0 0
  %384 = vmatpush1.bf16.msra.mxu0 0
  %385 = vmatprep.subr.bf16.mxu0 0
  %386 = vmatpush1.bf16.msra.mxu0 0
  %387 = vmatprep.subr.bf16.mxu0 0
  %388 = vmatpush1.bf16.msra.mxu0 0
  %389 = vmatprep.mubr.bf16.mxu0 0
  %390 = vmatmul.mubr.bf16.gmra.mrb[0].mxu0 %v287
  %v391 = vpop.f32.mrb[0].mxu0
  %v392 = vadd.f32 %v350, %v391
  %v393 = vpop.f32.mrb[0].mxu0
  %v394 = vpop.f32.mrb[0].mxu0
  %v395 = vpop.f32.mrb[0].mxu0
  %396 = vdwg.mxu0
  %v397 = vtanh.pop %v392
  %v398 = vmul.f32 %v397, %v276
  %v399 = vadd.f32 %v398, %v277
  %v400 = vmul.f32 %v399, 0.0
  %402 = vrot.lane.b32.xlu0 %v399, 96
  %v403 = vpop.permute.xlu0 %402
  %v405 = vmul.f32 %v399, %v403
  %407 = vrot.lane.b32.xlu0 %v405, 16
  %v408 = vpop.permute.xlu0 %407
  %v410 = vadd.f32 %v400, %v408
  %v411 = vtanh.pop %v410
  %413 = vrot.lane.b32.xlu0 %v411, 32
  %v414 = vpop.permute.xlu0 %413
  %v416 = vmul.f32 %v399, %v414
  %v417 = vld [vmem:[%s1] sm:$0xff]
  %vm418 = vcmp.gt.f32.partialorder %v417, 0.0
  %s419 = scalar_lea.vmem %s1, 56
  %v420 = vld [vmem:[%s419] sm:$0xff]
  %vm421 = vcmp.gt.f32.partialorder %v420, 0.0
  %v422 = vsel %vm418, 1, 0
  %423 = vset.pattern.permute.xlu0 0
  %424 = vperm.xlu0 %423, %v422
  %v425 = vpop.permute.xlu0 %424
  %vm426 = vcmp.eq.s32.totalorder %v425, 1
  %v427 = vsel %vm426, %v348, 0.0
  %429 = vrot.lane.b32.xlu0 %v427, 80
  %v430 = vpop.permute.xlu0 %429
  %432 = vst.msk [vmem:[%s8] sm:$0xff] %vm285, %v430
  %v433 = vsel %vm421, 1, 0
  %434 = vset.pattern.permute.xlu0 0
  %435 = vperm.xlu0 %434, %v433
  %v436 = vpop.permute.xlu0 %435
  %vm437 = vcmp.eq.s32.totalorder %v436, 1
  %v438 = vsel %vm437, %v416, 0.0
  %440 = vrot.lane.b32.xlu0 %v438, 96
  %v441 = vpop.permute.xlu0 %440
  %s443 = scalar_lea.vmem %s8, 56
  %vm444 = vcmask 261248
  %445 = vst.msk [vmem:[%s443] sm:$0xff] %vm444, %v441
  %v446 = vsel %vm426, %v342, 0.0
  %v447 = vsel %vm437, %v410, 0.0
  %s448 = scalar_lea.vmem [#allocation2], 8
  %v449 = vld [vmem:[%s448] sm:$0xff]
  %v450 = vpack.c.bf16 %v427, %v427
  %452 = vrot.lane.b32.xlu0 %v450, 80
  %v453 = vpop.permute.xlu0 %452
  %v455 = vsel %vm285, %v453, 0
  %457 = vmatprep.subr.bf16.mxu0 0
  %458 = vmatpush1.bf16.msra.mxu0 %v283
  %459 = vmatprep.subr.bf16.mxu0 0
  %460 = vmatpush1.bf16.msra.mxu0 0
  %461 = vmatprep.subr.bf16.mxu0 0
  %462 = vmatpush1.bf16.msra.mxu0 0
  %463 = vmatprep.subr.bf16.mxu0 0
  %464 = vmatpush1.bf16.msra.mxu0 0
  %465 = vmatprep.subr.bf16.mxu0 0
  %466 = vmatpush1.bf16.msra.mxu0 0
  %467 = vmatprep.subr.bf16.mxu0 0
  %468 = vmatpush1.bf16.msra.mxu0 0
  %469 = vmatprep.subr.bf16.mxu0 0
  %470 = vmatpush1.bf16.msra.mxu0 0
  %471 = vmatprep.subr.bf16.mxu0 0
  %472 = vmatpush1.bf16.msra.mxu0 0
  %473 = vmatprep.subr.bf16.mxu0 0
  %474 = vmatpush1.bf16.msra.mxu0 0
  %475 = vmatprep.subr.bf16.mxu0 0
  %476 = vmatpush1.bf16.msra.mxu0 0
  %477 = vmatprep.subr.bf16.mxu0 0
  %478 = vmatpush1.bf16.msra.mxu0 0
  %479 = vmatprep.subr.bf16.mxu0 0
  %480 = vmatpush1.bf16.msra.mxu0 0
  %481 = vmatprep.subr.bf16.mxu0 0
  %482 = vmatpush1.bf16.msra.mxu0 0
  %483 = vmatprep.subr.bf16.mxu0 0
  %484 = vmatpush1.bf16.msra.mxu0 0
  %485 = vmatprep.subr.bf16.mxu0 0
  %486 = vmatpush1.bf16.msra.mxu0 0
  %487 = vmatprep.subr.bf16.mxu0 0
  %488 = vmatpush1.bf16.msra.mxu0 0
  %489 = vmatprep.mubr.bf16.mxu0 0
  %490 = vmatmul.mubr.bf16.gmra.mrb[0].mxu0 %v455
  %v491 = vpop.f32.mrb[0].mxu0
  %v492 = vadd.f32 %v449, %v491
  %v493 = vpop.f32.mrb[0].mxu0
  %v494 = vpop.f32.mrb[0].mxu0
  %v495 = vpop.f32.mrb[0].mxu0
  %496 = vdwg.mxu0
  %v497 = vtanh.pop %v492
  %v498 = vmul.f32 %v497, %v276
  %v499 = vadd.f32 %v498, %v277
  %v500 = vmul.f32 %v499, %v446
  %502 = vrot.lane.b32.xlu0 %v499, 96
  %v503 = vpop.permute.xlu0 %502
  %v505 = vmul.f32 %v499, %v503
  %507 = vrot.lane.b32.xlu0 %v505, 16
  %v508 = vpop.permute.xlu0 %507
  %v510 = vadd.f32 %v500, %v508
  %v511 = vtanh.pop %v510
  %513 = vrot.lane.b32.xlu0 %v511, 32
  %v514 = vpop.permute.xlu0 %513
  %v516 = vmul.f32 %v499, %v514
  %s517 = scalar_lea.vmem [#allocation3], 48
  %v518 = vld [vmem:[%s517] sm:$0xff]
  %v519 = vpack.c.bf16 %v438, %v438
  %521 = vrot.lane.b32.xlu0 %v519, 80
  %v522 = vpop.permute.xlu0 %521
  %v524 = vsel %vm285, %v522, 0
  %526 = vmatprep.subr.bf16.mxu0 0
  %527 = vmatpush1.bf16.msra.mxu0 %v355
  %528 = vmatprep.subr.bf16.mxu0 0
  %529 = vmatpush1.bf16.msra.mxu0 0
  %530 = vmatprep.subr.bf16.mxu0 0
  %531 = vmatpush1.bf16.msra.mxu0 0
  %532 = vmatprep.subr.bf16.mxu0 0
  %533 = vmatpush1.bf16.msra.mxu0 0
  %534 = vmatprep.subr.bf16.mxu0 0
  %535 = vmatpush1.bf16.msra.mxu0 0
  %536 = vmatprep.subr.bf16.mxu0 0
  %537 = vmatpush1.bf16.msra.mxu0 0
  %538 = vmatprep.subr.bf16.mxu0 0
  %539 = vmatpush1.bf16.msra.mxu0 0
  %540 = vmatprep.subr.bf16.mxu0 0
  %541 = vmatpush1.bf16.msra.mxu0 0
  %542 = vmatprep.subr.bf16.mxu0 0
  %543 = vmatpush1.bf16.msra.mxu0 0
  %544 = vmatprep.subr.bf16.mxu0 0
  %545 = vmatpush1.bf16.msra.mxu0 0
  %546 = vmatprep.subr.bf16.mxu0 0
  %547 = vmatpush1.bf16.msra.mxu0 0
  %548 = vmatprep.subr.bf16.mxu0 0
  %549 = vmatpush1.bf16.msra.mxu0 0
  %550 = vmatprep.subr.bf16.mxu0 0
  %551 = vmatpush1.bf16.msra.mxu0 0
  %552 = vmatprep.subr.bf16.mxu0 0
  %553 = vmatpush1.bf16.msra.mxu0 0
  %554 = vmatprep.subr.bf16.mxu0 0
  %555 = vmatpush1.bf16.msra.mxu0 0
  %556 = vmatprep.subr.bf16.mxu0 0
  %557 = vmatpush1.bf16.msra.mxu0 0
  %558 = vmatprep.mubr.bf16.mxu0 0
  %559 = vmatmul.mubr.bf16.gmra.mrb[0].mxu0 %v524
  %v560 = vpop.f32.mrb[0].mxu0
  %v561 = vadd.f32 %v518, %v560
  %v562 = vpop.f32.mrb[0].mxu0
  %v563 = vpop.f32.mrb[0].mxu0
  %v564 = vpop.f32.mrb[0].mxu0
  %565 = vdwg.mxu0
  %v566 = vtanh.pop %v561
  %v567 = vmul.f32 %v566, %v276
  %v568 = vadd.f32 %v567, %v277
  %v569 = vmul.f32 %v568, %v447
  %571 = vrot.lane.b32.xlu0 %v568, 96
  %v572 = vpop.permute.xlu0 %571
  %v574 = vmul.f32 %v568, %v572
  %576 = vrot.lane.b32.xlu0 %v574, 16
  %v577 = vpop.permute.xlu0 %576
  %v579 = vadd.f32 %v569, %v577
  %v580 = vtanh.pop %v579
  %582 = vrot.lane.b32.xlu0 %v580, 32
  %v583 = vpop.permute.xlu0 %582
  %v585 = vmul.f32 %v568, %v583
  %s586 = scalar_lea.vmem %s1, 8
  %v587 = vld [vmem:[%s586] sm:$0xff]
  %vm588 = vcmp.gt.f32.partialorder %v587, 0.0
  %s589 = scalar_lea.vmem %s1, 48
  %v590 = vld [vmem:[%s589] sm:$0xff]
  %vm591 = vcmp.gt.f32.partialorder %v590, 0.0
  %v592 = vsel %vm588, 1, 0
  %593 = vset.pattern.permute.xlu0 0
  %594 = vperm.xlu0 %593, %v592
  %v595 = vpop.permute.xlu0 %594
  %vm596 = vcmp.eq.s32.totalorder %v595, 1
  %v597 = vsel %vm596, %v516, 0.0
  %599 = vrot.lane.b32.xlu0 %v597, 80
  %v600 = vpop.permute.xlu0 %599
  %s602 = scalar_lea.vmem %s8, 8
  %603 = vst.msk [vmem:[%s602] sm:$0xff] %vm285, %v600
  %v604 = vsel %vm591, 1, 0
  %605 = vset.pattern.permute.xlu0 0
  %606 = vperm.xlu0 %605, %v604
  %v607 = vpop.permute.xlu0 %606
  %vm608 = vcmp.eq.s32.totalorder %v607, 1
  %v609 = vsel %vm608, %v585, 0.0
  %611 = vrot.lane.b32.xlu0 %v609, 96
  %v612 = vpop.permute.xlu0 %611
  %s614 = scalar_lea.vmem %s8, 48
  %615 = vst.msk [vmem:[%s614] sm:$0xff] %vm444, %v612
  %v616 = vsel %vm596, %v516, %v427
  %v617 = vsel %vm596, %v510, %v446
  %v618 = vsel %vm608, %v585, %v438
  %v619 = vsel %vm608, %v579, %v447
  %s620 = scalar_lea.vmem [#allocation2], 16
  %v621 = vld [vmem:[%s620] sm:$0xff]
  %v622 = vpack.c.bf16 %v616, %v616
  %624 = vrot.lane.b32.xlu0 %v622, 80
  %v625 = vpop.permute.xlu0 %624
  %v627 = vsel %vm285, %v625, 0
  %629 = vmatprep.subr.bf16.mxu0 0
  %630 = vmatpush1.bf16.msra.mxu0 %v283
  %631 = vmatprep.subr.bf16.mxu0 0
  %632 = vmatpush1.bf16.msra.mxu0 0
  %633 = vmatprep.subr.bf16.mxu0 0
  %634 = vmatpush1.bf16.msra.mxu0 0
  %635 = vmatprep.subr.bf16.mxu0 0
  %636 = vmatpush1.bf16.msra.mxu0 0
  %637 = vmatprep.subr.bf16.mxu0 0
  %638 = vmatpush1.bf16.msra.mxu0 0
  %639 = vmatprep.subr.bf16.mxu0 0
  %640 = vmatpush1.bf16.msra.mxu0 0
  %641 = vmatprep.subr.bf16.mxu0 0
  %642 = vmatpush1.bf16.msra.mxu0 0
  %643 = vmatprep.subr.bf16.mxu0 0
  %644 = vmatpush1.bf16.msra.mxu0 0
  %645 = vmatprep.subr.bf16.mxu0 0
  %646 = vmatpush1.bf16.msra.mxu0 0
  %647 = vmatprep.subr.bf16.mxu0 0
  %648 = vmatpush1.bf16.msra.mxu0 0
  %649 = vmatprep.subr.bf16.mxu0 0
  %650 = vmatpush1.bf16.msra.mxu0 0
  %651 = vmatprep.subr.bf16.mxu0 0
  %652 = vmatpush1.bf16.msra.mxu0 0
  %653 = vmatprep.subr.bf16.mxu0 0
  %654 = vmatpush1.bf16.msra.mxu0 0
  %655 = vmatprep.subr.bf16.mxu0 0
  %656 = vmatpush1.bf16.msra.mxu0 0
  %657 = vmatprep.subr.bf16.mxu0 0
  %658 = vmatpush1.bf16.msra.mxu0 0
  %659 = vmatprep.subr.bf16.mxu0 0
  %660 = vmatpush1.bf16.msra.mxu0 0
  %661 = vmatprep.mubr.bf16.mxu0 0
  %662 = vmatmul.mubr.bf16.gmra.mrb[0].mxu0 %v627
  %v663 = vpop.f32.mrb[0].mxu0
  %v664 = vadd.f32 %v621, %v663
  %v665 = vpop.f32.mrb[0].mxu0
  %v666 = vpop.f32.mrb[0].mxu0
  %v667 = vpop.f32.mrb[0].mxu0
  %668 = vdwg.mxu0
  %v669 = vtanh.pop %v664
  %v670 = vmul.f32 %v669, %v276
  %v671 = vadd.f32 %v670, %v277
  %v672 = vmul.f32 %v671, %v617
  %674 = vrot.lane.b32.xlu0 %v671, 96
  %v675 = vpop.permute.xlu0 %674
  %v677 = vmul.f32 %v671, %v675
  %679 = vrot.lane.b32.xlu0 %v677, 16
  %v680 = vpop.permute.xlu0 %679
  %v682 = vadd.f32 %v672, %v680
  %v683 = vtanh.pop %v682
  %685 = vrot.lane.b32.xlu0 %v683, 32
  %v686 = vpop.permute.xlu0 %685
  %v688 = vmul.f32 %v671, %v686
  %s689 = scalar_lea.vmem [#allocation3], 40
  %v690 = vld [vmem:[%s689] sm:$0xff]
  %v691 = vpack.c.bf16 %v618, %v618
  %693 = vrot.lane.b32.xlu0 %v691, 80
  %v694 = vpop.permute.xlu0 %693
  %v696 = vsel %vm285, %v694, 0
  %698 = vmatprep.subr.bf16.mxu0 0
  %699 = vmatpush1.bf16.msra.mxu0 %v355
  %700 = vmatprep.subr.bf16.mxu0 0
  %701 = vmatpush1.bf16.msra.mxu0 0
  %702 = vmatprep.subr.bf16.mxu0 0
  %703 = vmatpush1.bf16.msra.mxu0 0
  %704 = vmatprep.subr.bf16.mxu0 0
  %705 = vmatpush1.bf16.msra.mxu0 0
  %706 = vmatprep.subr.bf16.mxu0 0
  %707 = vmatpush1.bf16.msra.mxu0 0
  %708 = vmatprep.subr.bf16.mxu0 0
  %709 = vmatpush1.bf16.msra.mxu0 0
  %710 = vmatprep.subr.bf16.mxu0 0
  %711 = vmatpush1.bf16.msra.mxu0 0
  %712 = vmatprep.subr.bf16.mxu0 0
  %713 = vmatpush1.bf16.msra.mxu0 0
  %714 = vmatprep.subr.bf16.mxu0 0
  %715 = vmatpush1.bf16.msra.mxu0 0
  %716 = vmatprep.subr.bf16.mxu0 0
  %717 = vmatpush1.bf16.msra.mxu0 0
  %718 = vmatprep.subr.bf16.mxu0 0
  %719 = vmatpush1.bf16.msra.mxu0 0
  %720 = vmatprep.subr.bf16.mxu0 0
  %721 = vmatpush1.bf16.msra.mxu0 0
  %722 = vmatprep.subr.bf16.mxu0 0
  %723 = vmatpush1.bf16.msra.mxu0 0
  %724 = vmatprep.subr.bf16.mxu0 0
  %725 = vmatpush1.bf16.msra.mxu0 0
  %726 = vmatprep.subr.bf16.mxu0 0
  %727 = vmatpush1.bf16.msra.mxu0 0
  %728 = vmatprep.subr.bf16.mxu0 0
  %729 = vmatpush1.bf16.msra.mxu0 0
  %730 = vmatprep.mubr.bf16.mxu0 0
  %731 = vmatmul.mubr.bf16.gmra.mrb[0].mxu0 %v696
  %v732 = vpop.f32.mrb[0].mxu0
  %v733 = vadd.f32 %v690, %v732
  %v734 = vpop.f32.mrb[0].mxu0
  %v735 = vpop.f32.mrb[0].mxu0
  %v736 = vpop.f32.mrb[0].mxu0
  %737 = vdwg.mxu0
  %v738 = vtanh.pop %v733
  %v739 = vmul.f32 %v738, %v276
  %v740 = vadd.f32 %v739, %v277
  %v741 = vmul.f32 %v740, %v619
  %743 = vrot.lane.b32.xlu0 %v740, 96
  %v744 = vpop.permute.xlu0 %743
  %v746 = vmul.f32 %v740, %v744
  %748 = vrot.lane.b32.xlu0 %v746, 16
  %v749 = vpop.permute.xlu0 %748
  %v751 = vadd.f32 %v741, %v749
  %v752 = vtanh.pop %v751
  %754 = vrot.lane.b32.xlu0 %v752, 32
  %v755 = vpop.permute.xlu0 %754
  %v757 = vmul.f32 %v740, %v755
  %s758 = scalar_lea.vmem %s1, 16
  %v759 = vld [vmem:[%s758] sm:$0xff]
  %vm760 = vcmp.gt.f32.partialorder %v759, 0.0
  %s761 = scalar_lea.vmem %s1, 40
  %v762 = vld [vmem:[%s761] sm:$0xff]
  %vm763 = vcmp.gt.f32.partialorder %v762, 0.0
  %v764 = vsel %vm760, 1, 0
  %765 = vset.pattern.permute.xlu0 0
  %766 = vperm.xlu0 %765, %v764
  %v767 = vpop.permute.xlu0 %766
  %vm768 = vcmp.eq.s32.totalorder %v767, 1
  %v769 = vsel %vm768, %v688, 0.0
  %771 = vrot.lane.b32.xlu0 %v769, 80
  %v772 = vpop.permute.xlu0 %771
  %s774 = scalar_lea.vmem %s8, 16
  %775 = vst.msk [vmem:[%s774] sm:$0xff] %vm285, %v772
  %v776 = vsel %vm763, 1, 0
  %777 = vset.pattern.permute.xlu0 0
  %778 = vperm.xlu0 %777, %v776
  %v779 = vpop.permute.xlu0 %778
  %vm780 = vcmp.eq.s32.totalorder %v779, 1
  %v781 = vsel %vm780, %v757, 0.0
  %783 = vrot.lane.b32.xlu0 %v781, 96
  %v784 = vpop.permute.xlu0 %783
  %s786 = scalar_lea.vmem %s8, 40
  %787 = vst.msk [vmem:[%s786] sm:$0xff] %vm444, %v784
  %v788 = vsel %vm768, %v688, %v616
  %v789 = vsel %vm768, %v682, %v617
  %v790 = vsel %vm780, %v757, %v618
  %v791 = vsel %vm780, %v751, %v619
  %s792 = scalar_lea.vmem [#allocation2], 24
  %v793 = vld [vmem:[%s792] sm:$0xff]
  %v794 = vpack.c.bf16 %v788, %v788
  %796 = vrot.lane.b32.xlu0 %v794, 80
  %v797 = vpop.permute.xlu0 %796
  %v799 = vsel %vm285, %v797, 0
  %801 = vmatprep.subr.bf16.mxu0 0
  %802 = vmatpush1.bf16.msra.mxu0 %v283
  %803 = vmatprep.subr.bf16.mxu0 0
  %804 = vmatpush1.bf16.msra.mxu0 0
  %805 = vmatprep.subr.bf16.mxu0 0
  %806 = vmatpush1.bf16.msra.mxu0 0
  %807 = vmatprep.subr.bf16.mxu0 0
  %808 = vmatpush1.bf16.msra.mxu0 0
  %809 = vmatprep.subr.bf16.mxu0 0
  %810 = vmatpush1.bf16.msra.mxu0 0
  %811 = vmatprep.subr.bf16.mxu0 0
  %812 = vmatpush1.bf16.msra.mxu0 0
  %813 = vmatprep.subr.bf16.mxu0 0
  %814 = vmatpush1.bf16.msra.mxu0 0
  %815 = vmatprep.subr.bf16.mxu0 0
  %816 = vmatpush1.bf16.msra.mxu0 0
  %817 = vmatprep.subr.bf16.mxu0 0
  %818 = vmatpush1.bf16.msra.mxu0 0
  %819 = vmatprep.subr.bf16.mxu0 0
  %820 = vmatpush1.bf16.msra.mxu0 0
  %821 = vmatprep.subr.bf16.mxu0 0
  %822 = vmatpush1.bf16.msra.mxu0 0
  %823 = vmatprep.subr.bf16.mxu0 0
  %824 = vmatpush1.bf16.msra.mxu0 0
  %825 = vmatprep.subr.bf16.mxu0 0
  %826 = vmatpush1.bf16.msra.mxu0 0
  %827 = vmatprep.subr.bf16.mxu0 0
  %828 = vmatpush1.bf16.msra.mxu0 0
  %829 = vmatprep.subr.bf16.mxu0 0
  %830 = vmatpush1.bf16.msra.mxu0 0
  %831 = vmatprep.subr.bf16.mxu0 0
  %832 = vmatpush1.bf16.msra.mxu0 0
  %833 = vmatprep.mubr.bf16.mxu0 0
  %834 = vmatmul.mubr.bf16.gmra.mrb[0].mxu0 %v799
  %v835 = vpop.f32.mrb[0].mxu0
  %v836 = vadd.f32 %v793, %v835
  %v837 = vpop.f32.mrb[0].mxu0
  %v838 = vpop.f32.mrb[0].mxu0
  %v839 = vpop.f32.mrb[0].mxu0
  %840 = vdwg.mxu0
  %v841 = vtanh.pop %v836
  %v842 = vmul.f32 %v841, %v276
  %v843 = vadd.f32 %v842, %v277
  %v844 = vmul.f32 %v843, %v789
  %846 = vrot.lane.b32.xlu0 %v843, 96
  %v847 = vpop.permute.xlu0 %846
  %v849 = vmul.f32 %v843, %v847
  %851 = vrot.lane.b32.xlu0 %v849, 16
  %v852 = vpop.permute.xlu0 %851
  %v854 = vadd.f32 %v844, %v852
  %v855 = vtanh.pop %v854
  %857 = vrot.lane.b32.xlu0 %v855, 32
  %v858 = vpop.permute.xlu0 %857
  %v860 = vmul.f32 %v843, %v858
  %s861 = scalar_lea.vmem [#allocation3], 32
  %v862 = vld [vmem:[%s861] sm:$0xff]
  %v863 = vpack.c.bf16 %v790, %v790
  %865 = vrot.lane.b32.xlu0 %v863, 80
  %v866 = vpop.permute.xlu0 %865
  %v868 = vsel %vm285, %v866, 0
  %870 = vmatprep.subr.bf16.mxu0 0
  %871 = vmatpush1.bf16.msra.mxu0 %v355
  %872 = vmatprep.subr.bf16.mxu0 0
  %873 = vmatpush1.bf16.msra.mxu0 0
  %874 = vmatprep.subr.bf16.mxu0 0
  %875 = vmatpush1.bf16.msra.mxu0 0
  %876 = vmatprep.subr.bf16.mxu0 0
  %877 = vmatpush1.bf16.msra.mxu0 0
  %878 = vmatprep.subr.bf16.mxu0 0
  %879 = vmatpush1.bf16.msra.mxu0 0
  %880 = vmatprep.subr.bf16.mxu0 0
  %881 = vmatpush1.bf16.msra.mxu0 0
  %882 = vmatprep.subr.bf16.mxu0 0
  %883 = vmatpush1.bf16.msra.mxu0 0
  %884 = vmatprep.subr.bf16.mxu0 0
  %885 = vmatpush1.bf16.msra.mxu0 0
  %886 = vmatprep.subr.bf16.mxu0 0
  %887 = vmatpush1.bf16.msra.mxu0 0
  %888 = vmatprep.subr.bf16.mxu0 0
  %889 = vmatpush1.bf16.msra.mxu0 0
  %890 = vmatprep.subr.bf16.mxu0 0
  %891 = vmatpush1.bf16.msra.mxu0 0
  %892 = vmatprep.subr.bf16.mxu0 0
  %893 = vmatpush1.bf16.msra.mxu0 0
  %894 = vmatprep.subr.bf16.mxu0 0
  %895 = vmatpush1.bf16.msra.mxu0 0
  %896 = vmatprep.subr.bf16.mxu0 0
  %897 = vmatpush1.bf16.msra.mxu0 0
  %898 = vmatprep.subr.bf16.mxu0 0
  %899 = vmatpush1.bf16.msra.mxu0 0
  %900 = vmatprep.subr.bf16.mxu0 0
  %901 = vmatpush1.bf16.msra.mxu0 0
  %902 = vmatprep.mubr.bf16.mxu0 0
  %903 = vmatmul.mubr.bf16.gmra.mrb[0].mxu0 %v868
  %v904 = vpop.f32.mrb[0].mxu0
  %v905 = vadd.f32 %v862, %v904
  %v906 = vpop.f32.mrb[0].mxu0
  %v907 = vpop.f32.mrb[0].mxu0
  %v908 = vpop.f32.mrb[0].mxu0
  %909 = vdwg.mxu0
  %v910 = vtanh.pop %v905
  %v911 = vmul.f32 %v910, %v276
  %v912 = vadd.f32 %v911, %v277
  %v913 = vmul.f32 %v912, %v791
  %915 = vrot.lane.b32.xlu0 %v912, 96
  %v916 = vpop.permute.xlu0 %915
  %v918 = vmul.f32 %v912, %v916
  %920 = vrot.lane.b32.xlu0 %v918, 16
  %v921 = vpop.permute.xlu0 %920
  %v923 = vadd.f32 %v913, %v921
  %v924 = vtanh.pop %v923
  %926 = vrot.lane.b32.xlu0 %v924, 32
  %v927 = vpop.permute.xlu0 %926
  %v929 = vmul.f32 %v912, %v927
  %s930 = scalar_lea.vmem %s1, 24
  %v931 = vld [vmem:[%s930] sm:$0xff]
  %vm932 = vcmp.gt.f32.partialorder %v931, 0.0
  %s933 = scalar_lea.vmem %s1, 32
  %v934 = vld [vmem:[%s933] sm:$0xff]
  %vm935 = vcmp.gt.f32.partialorder %v934, 0.0
  %v936 = vsel %vm932, 1, 0
  %937 = vset.pattern.permute.xlu0 0
  %938 = vperm.xlu0 %937, %v936
  %v939 = vpop.permute.xlu0 %938
  %vm940 = vcmp.eq.s32.totalorder %v939, 1
  %v941 = vsel %vm940, %v860, 0.0
  %943 = vrot.lane.b32.xlu0 %v941, 80
  %v944 = vpop.permute.xlu0 %943
  %s946 = scalar_lea.vmem %s8, 24
  %947 = vst.msk [vmem:[%s946] sm:$0xff] %vm285, %v944
  %v948 = vsel %vm935, 1, 0
  %949 = vset.pattern.permute.xlu0 0
  %950 = vperm.xlu0 %949, %v948
  %v951 = vpop.permute.xlu0 %950
  %vm952 = vcmp.eq.s32.totalorder %v951, 1
  %v953 = vsel %vm952, %v929, 0.0
  %955 = vrot.lane.b32.xlu0 %v953, 96
  %v956 = vpop.permute.xlu0 %955
  %s958 = scalar_lea.vmem %s8, 32
  %959 = vst.msk [vmem:[%s958] sm:$0xff] %vm444, %v956
  %v960 = vsel %vm940, %v860, %v788
  %v961 = vsel %vm940, %v854, %v789
  %v962 = vsel %vm952, %v929, %v790
  %v963 = vsel %vm952, %v923, %v791
  %s964 = scalar_lea.vmem [#allocation2], 32
  %v965 = vld [vmem:[%s964] sm:$0xff]
  %v966 = vpack.c.bf16 %v960, %v960
  %968 = vrot.lane.b32.xlu0 %v966, 80
  %v969 = vpop.permute.xlu0 %968
  %v971 = vsel %vm285, %v969, 0
  %973 = vmatprep.subr.bf16.mxu0 0
  %974 = vmatpush1.bf16.msra.mxu0 %v283
  %975 = vmatprep.subr.bf16.mxu0 0
  %976 = vmatpush1.bf16.msra.mxu0 0
  %977 = vmatprep.subr.bf16.mxu0 0
  %978 = vmatpush1.bf16.msra.mxu0 0
  %979 = vmatprep.subr.bf16.mxu0 0
  %980 = vmatpush1.bf16.msra.mxu0 0
  %981 = vmatprep.subr.bf16.mxu0 0
  %982 = vmatpush1.bf16.msra.mxu0 0
  %983 = vmatprep.subr.bf16.mxu0 0
  %984 = vmatpush1.bf16.msra.mxu0 0
  %985 = vmatprep.subr.bf16.mxu0 0
  %986 = vmatpush1.bf16.msra.mxu0 0
  %987 = vmatprep.subr.bf16.mxu0 0
  %988 = vmatpush1.bf16.msra.mxu0 0
  %989 = vmatprep.subr.bf16.mxu0 0
  %990 = vmatpush1.bf16.msra.mxu0 0
  %991 = vmatprep.subr.bf16.mxu0 0
  %992 = vmatpush1.bf16.msra.mxu0 0
  %993 = vmatprep.subr.bf16.mxu0 0
  %994 = vmatpush1.bf16.msra.mxu0 0
  %995 = vmatprep.subr.bf16.mxu0 0
  %996 = vmatpush1.bf16.msra.mxu0 0
  %997 = vmatprep.subr.bf16.mxu0 0
  %998 = vmatpush1.bf16.msra.mxu0 0
  %999 = vmatprep.subr.bf16.mxu0 0
  %1000 = vmatpush1.bf16.msra.mxu0 0
  %1001 = vmatprep.subr.bf16.mxu0 0
  %1002 = vmatpush1.bf16.msra.mxu0 0
  %1003 = vmatprep.subr.bf16.mxu0 0
  %1004 = vmatpush1.bf16.msra.mxu0 0
  %1005 = vmatprep.mubr.bf16.mxu0 0
  %1006 = vmatmul.mubr.bf16.gmra.mrb[0].mxu0 %v971
  %v1007 = vpop.f32.mrb[0].mxu0
  %v1008 = vadd.f32 %v965, %v1007
  %v1009 = vpop.f32.mrb[0].mxu0
  %v1010 = vpop.f32.mrb[0].mxu0
  %v1011 = vpop.f32.mrb[0].mxu0
  %1012 = vdwg.mxu0
  %v1013 = vtanh.pop %v1008
  %v1014 = vmul.f32 %v1013, %v276
  %v1015 = vadd.f32 %v1014, %v277
  %v1016 = vmul.f32 %v1015, %v961
  %1018 = vrot.lane.b32.xlu0 %v1015, 96
  %v1019 = vpop.permute.xlu0 %1018
  %v1021 = vmul.f32 %v1015, %v1019
  %1023 = vrot.lane.b32.xlu0 %v1021, 16
  %v1024 = vpop.permute.xlu0 %1023
  %v1026 = vadd.f32 %v1016, %v1024
  %v1027 = vtanh.pop %v1026
  %1029 = vrot.lane.b32.xlu0 %v1027, 32
  %v1030 = vpop.permute.xlu0 %1029
  %v1032 = vmul.f32 %v1015, %v1030
  %s1033 = scalar_lea.vmem [#allocation3], 24
  %v1034 = vld [vmem:[%s1033] sm:$0xff]
  %v1035 = vpack.c.bf16 %v962, %v962
  %1037 = vrot.lane.b32.xlu0 %v1035, 80
  %v1038 = vpop.permute.xlu0 %1037
  %v1040 = vsel %vm285, %v1038, 0
  %1042 = vmatprep.subr.bf16.mxu0 0
  %1043 = vmatpush1.bf16.msra.mxu0 %v355
  %1044 = vmatprep.subr.bf16.mxu0 0
  %1045 = vmatpush1.bf16.msra.mxu0 0
  %1046 = vmatprep.subr.bf16.mxu0 0
  %1047 = vmatpush1.bf16.msra.mxu0 0
  %1048 = vmatprep.subr.bf16.mxu0 0
  %1049 = vmatpush1.bf16.msra.mxu0 0
  %1050 = vmatprep.subr.bf16.mxu0 0
  %1051 = vmatpush1.bf16.msra.mxu0 0
  %1052 = vmatprep.subr.bf16.mxu0 0
  %1053 = vmatpush1.bf16.msra.mxu0 0
  %1054 = vmatprep.subr.bf16.mxu0 0
  %1055 = vmatpush1.bf16.msra.mxu0 0
  %1056 = vmatprep.subr.bf16.mxu0 0
  %1057 = vmatpush1.bf16.msra.mxu0 0
  %1058 = vmatprep.subr.bf16.mxu0 0
  %1059 = vmatpush1.bf16.msra.mxu0 0
  %1060 = vmatprep.subr.bf16.mxu0 0
  %1061 = vmatpush1.bf16.msra.mxu0 0
  %1062 = vmatprep.subr.bf16.mxu0 0
  %1063 = vmatpush1.bf16.msra.mxu0 0
  %1064 = vmatprep.subr.bf16.mxu0 0
  %1065 = vmatpush1.bf16.msra.mxu0 0
  %1066 = vmatprep.subr.bf16.mxu0 0
  %1067 = vmatpush1.bf16.msra.mxu0 0
  %1068 = vmatprep.subr.bf16.mxu0 0
  %1069 = vmatpush1.bf16.msra.mxu0 0
  %1070 = vmatprep.subr.bf16.mxu0 0
  %1071 = vmatpush1.bf16.msra.mxu0 0
  %1072 = vmatprep.subr.bf16.mxu0 0
  %1073 = vmatpush1.bf16.msra.mxu0 0
  %1074 = vmatprep.mubr.bf16.mxu0 0
  %1075 = vmatmul.mubr.bf16.gmra.mrb[0].mxu0 %v1040
  %v1076 = vpop.f32.mrb[0].mxu0
  %v1077 = vadd.f32 %v1034, %v1076
  %v1078 = vpop.f32.mrb[0].mxu0
  %v1079 = vpop.f32.mrb[0].mxu0
  %v1080 = vpop.f32.mrb[0].mxu0
  %1081 = vdwg.mxu0
  %v1082 = vtanh.pop %v1077
  %v1083 = vmul.f32 %v1082, %v276
  %v1084 = vadd.f32 %v1083, %v277
  %v1085 = vmul.f32 %v1084, %v963
  %1087 = vrot.lane.b32.xlu0 %v1084, 96
  %v1088 = vpop.permute.xlu0 %1087
  %v1090 = vmul.f32 %v1084, %v1088
  %1092 = vrot.lane.b32.xlu0 %v1090, 16
  %v1093 = vpop.permute.xlu0 %1092
  %v1095 = vadd.f32 %v1085, %v1093
  %v1096 = vtanh.pop %v1095
  %1098 = vrot.lane.b32.xlu0 %v1096, 32
  %v1099 = vpop.permute.xlu0 %1098
  %v1101 = vmul.f32 %v1084, %v1099
  %v1102 = vld [vmem:[%s933] sm:$0xff]
  %vm1103 = vcmp.gt.f32.partialorder %v1102, 0.0
  %v1104 = vld [vmem:[%s930] sm:$0xff]
  %vm1105 = vcmp.gt.f32.partialorder %v1104, 0.0
  %v1106 = vsel %vm1103, 1, 0
  %1107 = vset.pattern.permute.xlu0 0
  %1108 = vperm.xlu0 %1107, %v1106
  %v1109 = vpop.permute.xlu0 %1108
  %vm1110 = vcmp.eq.s32.totalorder %v1109, 1
  %v1111 = vsel %vm1110, %v1032, 0.0
  %1113 = vrot.lane.b32.xlu0 %v1111, 80
  %v1114 = vpop.permute.xlu0 %1113
  %1116 = vst.msk [vmem:[%s958] sm:$0xff] %vm285, %v1114
  %v1117 = vsel %vm1105, 1, 0
  %1118 = vset.pattern.permute.xlu0 0
  %1119 = vperm.xlu0 %1118, %v1117
  %v1120 = vpop.permute.xlu0 %1119
  %vm1121 = vcmp.eq.s32.totalorder %v1120, 1
  %v1122 = vsel %vm1121, %v1101, 0.0
  %1124 = vrot.lane.b32.xlu0 %v1122, 96
  %v1125 = vpop.permute.xlu0 %1124
  %1127 = vst.msk [vmem:[%s946] sm:$0xff] %vm444, %v1125
  %v1128 = vsel %vm1110, %v1032, %v960
  %v1129 = vsel %vm1110, %v1026, %v961
  %v1130 = vsel %vm1121, %v1101, %v962
  %v1131 = vsel %vm1121, %v1095, %v963
  %s1132 = scalar_lea.vmem [#allocation2], 40
  %v1133 = vld [vmem:[%s1132] sm:$0xff]
  %v1134 = vpack.c.bf16 %v1128, %v1128
  %1136 = vrot.lane.b32.xlu0 %v1134, 80
  %v1137 = vpop.permute.xlu0 %1136
  %v1139 = vsel %vm285, %v1137, 0
  %1141 = vmatprep.subr.bf16.mxu0 0
  %1142 = vmatpush1.bf16.msra.mxu0 %v283
  %1143 = vmatprep.subr.bf16.mxu0 0
  %1144 = vmatpush1.bf16.msra.mxu0 0
  %1145 = vmatprep.subr.bf16.mxu0 0
  %1146 = vmatpush1.bf16.msra.mxu0 0
  %1147 = vmatprep.subr.bf16.mxu0 0
  %1148 = vmatpush1.bf16.msra.mxu0 0
  %1149 = vmatprep.subr.bf16.mxu0 0
  %1150 = vmatpush1.bf16.msra.mxu0 0
  %1151 = vmatprep.subr.bf16.mxu0 0
  %1152 = vmatpush1.bf16.msra.mxu0 0
  %1153 = vmatprep.subr.bf16.mxu0 0
  %1154 = vmatpush1.bf16.msra.mxu0 0
  %1155 = vmatprep.subr.bf16.mxu0 0
  %1156 = vmatpush1.bf16.msra.mxu0 0
  %1157 = vmatprep.subr.bf16.mxu0 0
  %1158 = vmatpush1.bf16.msra.mxu0 0
  %1159 = vmatprep.subr.bf16.mxu0 0
  %1160 = vmatpush1.bf16.msra.mxu0 0
  %1161 = vmatprep.subr.bf16.mxu0 0
  %1162 = vmatpush1.bf16.msra.mxu0 0
  %1163 = vmatprep.subr.bf16.mxu0 0
  %1164 = vmatpush1.bf16.msra.mxu0 0
  %1165 = vmatprep.subr.bf16.mxu0 0
  %1166 = vmatpush1.bf16.msra.mxu0 0
  %1167 = vmatprep.subr.bf16.mxu0 0
  %1168 = vmatpush1.bf16.msra.mxu0 0
  %1169 = vmatprep.subr.bf16.mxu0 0
  %1170 = vmatpush1.bf16.msra.mxu0 0
  %1171 = vmatprep.subr.bf16.mxu0 0
  %1172 = vmatpush1.bf16.msra.mxu0 0
  %1173 = vmatprep.mubr.bf16.mxu0 0
  %1174 = vmatmul.mubr.bf16.gmra.mrb[0].mxu0 %v1139
  %v1175 = vpop.f32.mrb[0].mxu0
  %v1176 = vadd.f32 %v1133, %v1175
  %v1177 = vpop.f32.mrb[0].mxu0
  %v1178 = vpop.f32.mrb[0].mxu0
  %v1179 = vpop.f32.mrb[0].mxu0
  %1180 = vdwg.mxu0
  %v1181 = vtanh.pop %v1176
  %v1182 = vmul.f32 %v1181, %v276
  %v1183 = vadd.f32 %v1182, %v277
  %v1184 = vmul.f32 %v1183, %v1129
  %1186 = vrot.lane.b32.xlu0 %v1183, 96
  %v1187 = vpop.permute.xlu0 %1186
  %v1189 = vmul.f32 %v1183, %v1187
  %1191 = vrot.lane.b32.xlu0 %v1189, 16
  %v1192 = vpop.permute.xlu0 %1191
  %v1194 = vadd.f32 %v1184, %v1192
  %v1195 = vtanh.pop %v1194
  %1197 = vrot.lane.b32.xlu0 %v1195, 32
  %v1198 = vpop.permute.xlu0 %1197
  %v1200 = vmul.f32 %v1183, %v1198
  %s1201 = scalar_lea.vmem [#allocation3], 16
  %v1202 = vld [vmem:[%s1201] sm:$0xff]
  %v1203 = vpack.c.bf16 %v1130, %v1130
  %1205 = vrot.lane.b32.xlu0 %v1203, 80
  %v1206 = vpop.permute.xlu0 %1205
  %v1208 = vsel %vm285, %v1206, 0
  %1210 = vmatprep.subr.bf16.mxu0 0
  %1211 = vmatpush1.bf16.msra.mxu0 %v355
  %1212 = vmatprep.subr.bf16.mxu0 0
  %1213 = vmatpush1.bf16.msra.mxu0 0
  %1214 = vmatprep.subr.bf16.mxu0 0
  %1215 = vmatpush1.bf16.msra.mxu0 0
  %1216 = vmatprep.subr.bf16.mxu0 0
  %1217 = vmatpush1.bf16.msra.mxu0 0
  %1218 = vmatprep.subr.bf16.mxu0 0
  %1219 = vmatpush1.bf16.msra.mxu0 0
  %1220 = vmatprep.subr.bf16.mxu0 0
  %1221 = vmatpush1.bf16.msra.mxu0 0
  %1222 = vmatprep.subr.bf16.mxu0 0
  %1223 = vmatpush1.bf16.msra.mxu0 0
  %1224 = vmatprep.subr.bf16.mxu0 0
  %1225 = vmatpush1.bf16.msra.mxu0 0
  %1226 = vmatprep.subr.bf16.mxu0 0
  %1227 = vmatpush1.bf16.msra.mxu0 0
  %1228 = vmatprep.subr.bf16.mxu0 0
  %1229 = vmatpush1.bf16.msra.mxu0 0
  %1230 = vmatprep.subr.bf16.mxu0 0
  %1231 = vmatpush1.bf16.msra.mxu0 0
  %1232 = vmatprep.subr.bf16.mxu0 0
  %1233 = vmatpush1.bf16.msra.mxu0 0
  %1234 = vmatprep.subr.bf16.mxu0 0
  %1235 = vmatpush1.bf16.msra.mxu0 0
  %1236 = vmatprep.subr.bf16.mxu0 0
  %1237 = vmatpush1.bf16.msra.mxu0 0
  %1238 = vmatprep.subr.bf16.mxu0 0
  %1239 = vmatpush1.bf16.msra.mxu0 0
  %1240 = vmatprep.subr.bf16.mxu0 0
  %1241 = vmatpush1.bf16.msra.mxu0 0
  %1242 = vmatprep.mubr.bf16.mxu0 0
  %1243 = vmatmul.mubr.bf16.gmra.mrb[0].mxu0 %v1208
  %v1244 = vpop.f32.mrb[0].mxu0
  %v1245 = vadd.f32 %v1202, %v1244
  %v1246 = vpop.f32.mrb[0].mxu0
  %v1247 = vpop.f32.mrb[0].mxu0
  %v1248 = vpop.f32.mrb[0].mxu0
  %1249 = vdwg.mxu0
  %v1250 = vtanh.pop %v1245
  %v1251 = vmul.f32 %v1250, %v276
  %v1252 = vadd.f32 %v1251, %v277
  %v1253 = vmul.f32 %v1252, %v1131
  %1255 = vrot.lane.b32.xlu0 %v1252, 96
  %v1256 = vpop.permute.xlu0 %1255
  %v1258 = vmul.f32 %v1252, %v1256
  %1260 = vrot.lane.b32.xlu0 %v1258, 16
  %v1261 = vpop.permute.xlu0 %1260
  %v1263 = vadd.f32 %v1253, %v1261
  %v1264 = vtanh.pop %v1263
  %1266 = vrot.lane.b32.xlu0 %v1264, 32
  %v1267 = vpop.permute.xlu0 %1266
  %v1269 = vmul.f32 %v1252, %v1267
  %v1270 = vld [vmem:[%s761] sm:$0xff]
  %vm1271 = vcmp.gt.f32.partialorder %v1270, 0.0
  %v1272 = vld [vmem:[%s758] sm:$0xff]
  %vm1273 = vcmp.gt.f32.partialorder %v1272, 0.0
  %v1274 = vsel %vm1271, 1, 0
  %1275 = vset.pattern.permute.xlu0 0
  %1276 = vperm.xlu0 %1275, %v1274
  %v1277 = vpop.permute.xlu0 %1276
  %vm1278 = vcmp.eq.s32.totalorder %v1277, 1
  %v1279 = vsel %vm1278, %v1200, 0.0
  %1281 = vrot.lane.b32.xlu0 %v1279, 80
  %v1282 = vpop.permute.xlu0 %1281
  %1284 = vst.msk [vmem:[%s786] sm:$0xff] %vm285, %v1282
  %v1285 = vsel %vm1273, 1, 0
  %1286 = vset.pattern.permute.xlu0 0
  %1287 = vperm.xlu0 %1286, %v1285
  %v1288 = vpop.permute.xlu0 %1287
  %vm1289 = vcmp.eq.s32.totalorder %v1288, 1
  %v1290 = vsel %vm1289, %v1269, 0.0
  %1292 = vrot.lane.b32.xlu0 %v1290, 96
  %v1293 = vpop.permute.xlu0 %1292
  %1295 = vst.msk [vmem:[%s774] sm:$0xff] %vm444, %v1293
  %v1296 = vsel %vm1278, %v1200, %v1128
  %v1297 = vsel %vm1278, %v1194, %v1129
  %v1298 = vsel %vm1289, %v1269, %v1130
  %v1299 = vsel %vm1289, %v1263, %v1131
  %s1300 = scalar_lea.vmem [#allocation2], 48
  %v1301 = vld [vmem:[%s1300] sm:$0xff]
  %v1302 = vpack.c.bf16 %v1296, %v1296
  %1304 = vrot.lane.b32.xlu0 %v1302, 80
  %v1305 = vpop.permute.xlu0 %1304
  %v1307 = vsel %vm285, %v1305, 0
  %1309 = vmatprep.subr.bf16.mxu0 0
  %1310 = vmatpush1.bf16.msra.mxu0 %v283
  %1311 = vmatprep.subr.bf16.mxu0 0
  %1312 = vmatpush1.bf16.msra.mxu0 0
  %1313 = vmatprep.subr.bf16.mxu0 0
  %1314 = vmatpush1.bf16.msra.mxu0 0
  %1315 = vmatprep.subr.bf16.mxu0 0
  %1316 = vmatpush1.bf16.msra.mxu0 0
  %1317 = vmatprep.subr.bf16.mxu0 0
  %1318 = vmatpush1.bf16.msra.mxu0 0
  %1319 = vmatprep.subr.bf16.mxu0 0
  %1320 = vmatpush1.bf16.msra.mxu0 0
  %1321 = vmatprep.subr.bf16.mxu0 0
  %1322 = vmatpush1.bf16.msra.mxu0 0
  %1323 = vmatprep.subr.bf16.mxu0 0
  %1324 = vmatpush1.bf16.msra.mxu0 0
  %1325 = vmatprep.subr.bf16.mxu0 0
  %1326 = vmatpush1.bf16.msra.mxu0 0
  %1327 = vmatprep.subr.bf16.mxu0 0
  %1328 = vmatpush1.bf16.msra.mxu0 0
  %1329 = vmatprep.subr.bf16.mxu0 0
  %1330 = vmatpush1.bf16.msra.mxu0 0
  %1331 = vmatprep.subr.bf16.mxu0 0
  %1332 = vmatpush1.bf16.msra.mxu0 0
  %1333 = vmatprep.subr.bf16.mxu0 0
  %1334 = vmatpush1.bf16.msra.mxu0 0
  %1335 = vmatprep.subr.bf16.mxu0 0
  %1336 = vmatpush1.bf16.msra.mxu0 0
  %1337 = vmatprep.subr.bf16.mxu0 0
  %1338 = vmatpush1.bf16.msra.mxu0 0
  %1339 = vmatprep.subr.bf16.mxu0 0
  %1340 = vmatpush1.bf16.msra.mxu0 0
  %1341 = vmatprep.mubr.bf16.mxu0 0
  %1342 = vmatmul.mubr.bf16.gmra.mrb[0].mxu0 %v1307
  %v1343 = vpop.f32.mrb[0].mxu0
  %v1344 = vadd.f32 %v1301, %v1343
  %v1345 = vpop.f32.mrb[0].mxu0
  %v1346 = vpop.f32.mrb[0].mxu0
  %v1347 = vpop.f32.mrb[0].mxu0
  %1348 = vdwg.mxu0
  %v1349 = vtanh.pop %v1344
  %v1350 = vmul.f32 %v1349, %v276
  %v1351 = vadd.f32 %v1350, %v277
  %v1352 = vmul.f32 %v1351, %v1297
  %1354 = vrot.lane.b32.xlu0 %v1351, 96
  %v1355 = vpop.permute.xlu0 %1354
  %v1357 = vmul.f32 %v1351, %v1355
  %1359 = vrot.lane.b32.xlu0 %v1357, 16
  %v1360 = vpop.permute.xlu0 %1359
  %v1362 = vadd.f32 %v1352, %v1360
  %v1363 = vtanh.pop %v1362
  %1365 = vrot.lane.b32.xlu0 %v1363, 32
  %v1366 = vpop.permute.xlu0 %1365
  %v1368 = vmul.f32 %v1351, %v1366
  %s1369 = scalar_lea.vmem [#allocation3], 8
  %v1370 = vld [vmem:[%s1369] sm:$0xff]
  %v1371 = vpack.c.bf16 %v1298, %v1298
  %1373 = vrot.lane.b32.xlu0 %v1371, 80
  %v1374 = vpop.permute.xlu0 %1373
  %v1376 = vsel %vm285, %v1374, 0
  %1378 = vmatprep.subr.bf16.mxu0 0
  %1379 = vmatpush1.bf16.msra.mxu0 %v355
  %1380 = vmatprep.subr.bf16.mxu0 0
  %1381 = vmatpush1.bf16.msra.mxu0 0
  %1382 = vmatprep.subr.bf16.mxu0 0
  %1383 = vmatpush1.bf16.msra.mxu0 0
  %1384 = vmatprep.subr.bf16.mxu0 0
  %1385 = vmatpush1.bf16.msra.mxu0 0
  %1386 = vmatprep.subr.bf16.mxu0 0
  %1387 = vmatpush1.bf16.msra.mxu0 0
  %1388 = vmatprep.subr.bf16.mxu0 0
  %1389 = vmatpush1.bf16.msra.mxu0 0
  %1390 = vmatprep.subr.bf16.mxu0 0
  %1391 = vmatpush1.bf16.msra.mxu0 0
  %1392 = vmatprep.subr.bf16.mxu0 0
  %1393 = vmatpush1.bf16.msra.mxu0 0
  %1394 = vmatprep.subr.bf16.mxu0 0
  %1395 = vmatpush1.bf16.msra.mxu0 0
  %1396 = vmatprep.subr.bf16.mxu0 0
  %1397 = vmatpush1.bf16.msra.mxu0 0
  %1398 = vmatprep.subr.bf16.mxu0 0
  %1399 = vmatpush1.bf16.msra.mxu0 0
  %1400 = vmatprep.subr.bf16.mxu0 0
  %1401 = vmatpush1.bf16.msra.mxu0 0
  %1402 = vmatprep.subr.bf16.mxu0 0
  %1403 = vmatpush1.bf16.msra.mxu0 0
  %1404 = vmatprep.subr.bf16.mxu0 0
  %1405 = vmatpush1.bf16.msra.mxu0 0
  %1406 = vmatprep.subr.bf16.mxu0 0
  %1407 = vmatpush1.bf16.msra.mxu0 0
  %1408 = vmatprep.subr.bf16.mxu0 0
  %1409 = vmatpush1.bf16.msra.mxu0 0
  %1410 = vmatprep.mubr.bf16.mxu0 0
  %1411 = vmatmul.mubr.bf16.gmra.mrb[0].mxu0 %v1376
  %v1412 = vpop.f32.mrb[0].mxu0
  %v1413 = vadd.f32 %v1370, %v1412
  %v1414 = vpop.f32.mrb[0].mxu0
  %v1415 = vpop.f32.mrb[0].mxu0
  %v1416 = vpop.f32.mrb[0].mxu0
  %1417 = vdwg.mxu0
  %v1418 = vtanh.pop %v1413
  %v1419 = vmul.f32 %v1418, %v276
  %v1420 = vadd.f32 %v1419, %v277
  %v1421 = vmul.f32 %v1420, %v1299
  %1423 = vrot.lane.b32.xlu0 %v1420, 96
  %v1424 = vpop.permute.xlu0 %1423
  %v1426 = vmul.f32 %v1420, %v1424
  %1428 = vrot.lane.b32.xlu0 %v1426, 16
  %v1429 = vpop.permute.xlu0 %1428
  %v1431 = vadd.f32 %v1421, %v1429
  %v1432 = vtanh.pop %v1431
  %1434 = vrot.lane.b32.xlu0 %v1432, 32
  %v1435 = vpop.permute.xlu0 %1434
  %v1437 = vmul.f32 %v1420, %v1435
  %v1438 = vld [vmem:[%s589] sm:$0xff]
  %vm1439 = vcmp.gt.f32.partialorder %v1438, 0.0
  %v1440 = vld [vmem:[%s586] sm:$0xff]
  %vm1441 = vcmp.gt.f32.partialorder %v1440, 0.0
  %v1442 = vsel %vm1439, 1, 0
  %1443 = vset.pattern.permute.xlu0 0
  %1444 = vperm.xlu0 %1443, %v1442
  %v1445 = vpop.permute.xlu0 %1444
  %vm1446 = vcmp.eq.s32.totalorder %v1445, 1
  %v1447 = vsel %vm1446, %v1368, 0.0
  %1449 = vrot.lane.b32.xlu0 %v1447, 80
  %v1450 = vpop.permute.xlu0 %1449
  %1452 = vst.msk [vmem:[%s614] sm:$0xff] %vm285, %v1450
  %v1453 = vsel %vm1441, 1, 0
  %1454 = vset.pattern.permute.xlu0 0
  %1455 = vperm.xlu0 %1454, %v1453
  %v1456 = vpop.permute.xlu0 %1455
  %vm1457 = vcmp.eq.s32.totalorder %v1456, 1
  %v1458 = vsel %vm1457, %v1437, 0.0
  %1460 = vrot.lane.b32.xlu0 %v1458, 96
  %v1461 = vpop.permute.xlu0 %1460
  %1463 = vst.msk [vmem:[%s602] sm:$0xff] %vm444, %v1461
  %v1464 = vsel %vm1446, %v1368, %v1296
  %v1465 = vsel %vm1446, %v1362, %v1297
  %v1466 = vsel %vm1457, %v1437, %v1298
  %v1467 = vsel %vm1457, %v1431, %v1299
  %s1468 = scalar_lea.vmem [#allocation2], 56
  %v1469 = vld [vmem:[%s1468] sm:$0xff]
  %v1470 = vpack.c.bf16 %v1464, %v1464
  %1472 = vrot.lane.b32.xlu0 %v1470, 80
  %v1473 = vpop.permute.xlu0 %1472
  %v1475 = vsel %vm285, %v1473, 0
  %1477 = vmatprep.subr.bf16.mxu0 0
  %1478 = vmatpush1.bf16.msra.mxu0 %v283
  %1479 = vmatprep.subr.bf16.mxu0 0
  %1480 = vmatpush1.bf16.msra.mxu0 0
  %1481 = vmatprep.subr.bf16.mxu0 0
  %1482 = vmatpush1.bf16.msra.mxu0 0
  %1483 = vmatprep.subr.bf16.mxu0 0
  %1484 = vmatpush1.bf16.msra.mxu0 0
  %1485 = vmatprep.subr.bf16.mxu0 0
  %1486 = vmatpush1.bf16.msra.mxu0 0
  %1487 = vmatprep.subr.bf16.mxu0 0
  %1488 = vmatpush1.bf16.msra.mxu0 0
  %1489 = vmatprep.subr.bf16.mxu0 0
  %1490 = vmatpush1.bf16.msra.mxu0 0
  %1491 = vmatprep.subr.bf16.mxu0 0
  %1492 = vmatpush1.bf16.msra.mxu0 0
  %1493 = vmatprep.subr.bf16.mxu0 0
  %1494 = vmatpush1.bf16.msra.mxu0 0
  %1495 = vmatprep.subr.bf16.mxu0 0
  %1496 = vmatpush1.bf16.msra.mxu0 0
  %1497 = vmatprep.subr.bf16.mxu0 0
  %1498 = vmatpush1.bf16.msra.mxu0 0
  %1499 = vmatprep.subr.bf16.mxu0 0
  %1500 = vmatpush1.bf16.msra.mxu0 0
  %1501 = vmatprep.subr.bf16.mxu0 0
  %1502 = vmatpush1.bf16.msra.mxu0 0
  %1503 = vmatprep.subr.bf16.mxu0 0
  %1504 = vmatpush1.bf16.msra.mxu0 0
  %1505 = vmatprep.subr.bf16.mxu0 0
  %1506 = vmatpush1.bf16.msra.mxu0 0
  %1507 = vmatprep.subr.bf16.mxu0 0
  %1508 = vmatpush1.bf16.msra.mxu0 0
  %1509 = vmatprep.mubr.bf16.mxu0 0
  %1510 = vmatmul.mubr.bf16.gmra.mrb[0].mxu0 %v1475
  %v1511 = vpop.f32.mrb[0].mxu0
  %v1512 = vadd.f32 %v1469, %v1511
  %v1513 = vpop.f32.mrb[0].mxu0
  %v1514 = vpop.f32.mrb[0].mxu0
  %v1515 = vpop.f32.mrb[0].mxu0
  %1516 = vdwg.mxu0
  %v1517 = vtanh.pop %v1512
  %v1518 = vmul.f32 %v1517, %v276
  %v1519 = vadd.f32 %v1518, %v277
  %v1520 = vmul.f32 %v1519, %v1465
  %1522 = vrot.lane.b32.xlu0 %v1519, 96
  %v1523 = vpop.permute.xlu0 %1522
  %v1525 = vmul.f32 %v1519, %v1523
  %1527 = vrot.lane.b32.xlu0 %v1525, 16
  %v1528 = vpop.permute.xlu0 %1527
  %v1530 = vadd.f32 %v1520, %v1528
  %v1531 = vtanh.pop %v1530
  %1533 = vrot.lane.b32.xlu0 %v1531, 32
  %v1534 = vpop.permute.xlu0 %1533
  %v1536 = vmul.f32 %v1519, %v1534
  %v1537 = vld [vmem:[#allocation3] sm:$0xff]
  %v1538 = vpack.c.bf16 %v1466, %v1466
  %1540 = vrot.lane.b32.xlu0 %v1538, 80
  %v1541 = vpop.permute.xlu0 %1540
  %v1543 = vsel %vm285, %v1541, 0
  %1545 = vmatprep.subr.bf16.mxu0 0
  %1546 = vmatpush1.bf16.msra.mxu0 %v355
  %1547 = vmatprep.subr.bf16.mxu0 0
  %1548 = vmatpush1.bf16.msra.mxu0 0
  %1549 = vmatprep.subr.bf16.mxu0 0
  %1550 = vmatpush1.bf16.msra.mxu0 0
  %1551 = vmatprep.subr.bf16.mxu0 0
  %1552 = vmatpush1.bf16.msra.mxu0 0
  %1553 = vmatprep.subr.bf16.mxu0 0
  %1554 = vmatpush1.bf16.msra.mxu0 0
  %1555 = vmatprep.subr.bf16.mxu0 0
  %1556 = vmatpush1.bf16.msra.mxu0 0
  %1557 = vmatprep.subr.bf16.mxu0 0
  %1558 = vmatpush1.bf16.msra.mxu0 0
  %1559 = vmatprep.subr.bf16.mxu0 0
  %1560 = vmatpush1.bf16.msra.mxu0 0
  %1561 = vmatprep.subr.bf16.mxu0 0
  %1562 = vmatpush1.bf16.msra.mxu0 0
  %1563 = vmatprep.subr.bf16.mxu0 0
  %1564 = vmatpush1.bf16.msra.mxu0 0
  %1565 = vmatprep.subr.bf16.mxu0 0
  %1566 = vmatpush1.bf16.msra.mxu0 0
  %1567 = vmatprep.subr.bf16.mxu0 0
  %1568 = vmatpush1.bf16.msra.mxu0 0
  %1569 = vmatprep.subr.bf16.mxu0 0
  %1570 = vmatpush1.bf16.msra.mxu0 0
  %1571 = vmatprep.subr.bf16.mxu0 0
  %1572 = vmatpush1.bf16.msra.mxu0 0
  %1573 = vmatprep.subr.bf16.mxu0 0
  %1574 = vmatpush1.bf16.msra.mxu0 0
  %1575 = vmatprep.subr.bf16.mxu0 0
  %1576 = vmatpush1.bf16.msra.mxu0 0
  %1577 = vmatprep.mubr.bf16.mxu0 0
  %1578 = vmatmul.mubr.bf16.gmra.mrb[0].mxu0 %v1543
  %v1579 = vpop.f32.mrb[0].mxu0
  %v1580 = vadd.f32 %v1537, %v1579
  %v1581 = vpop.f32.mrb[0].mxu0
  %v1582 = vpop.f32.mrb[0].mxu0
  %v1583 = vpop.f32.mrb[0].mxu0
  %1584 = vdwg.mxu0
  %v1585 = vtanh.pop %v1580
  %v1586 = vmul.f32 %v1585, %v276
  %v1587 = vadd.f32 %v1586, %v277
  %v1588 = vmul.f32 %v1587, %v1467
  %1590 = vrot.lane.b32.xlu0 %v1587, 96
  %v1591 = vpop.permute.xlu0 %1590
  %v1593 = vmul.f32 %v1587, %v1591
  %1595 = vrot.lane.b32.xlu0 %v1593, 16
  %v1596 = vpop.permute.xlu0 %1595
  %v1598 = vadd.f32 %v1588, %v1596
  %v1599 = vtanh.pop %v1598
  %1601 = vrot.lane.b32.xlu0 %v1599, 32
  %v1602 = vpop.permute.xlu0 %1601
  %v1604 = vmul.f32 %v1587, %v1602
  %v1605 = vld [vmem:[%s419] sm:$0xff]
  %vm1606 = vcmp.gt.f32.partialorder %v1605, 0.0
  %v1607 = vld [vmem:[%s1] sm:$0xff]
  %vm1608 = vcmp.gt.f32.partialorder %v1607, 0.0
  %v1609 = vsel %vm1606, 1, 0
  %1610 = vset.pattern.permute.xlu0 0
  %1611 = vperm.xlu0 %1610, %v1609
  %v1612 = vpop.permute.xlu0 %1611
  %vm1613 = vcmp.eq.s32.totalorder %v1612, 1
  %v1614 = vsel %vm1613, %v1536, 0.0
  %1616 = vrot.lane.b32.xlu0 %v1614, 80
  %v1617 = vpop.permute.xlu0 %1616
  %1619 = vst.msk [vmem:[%s443] sm:$0xff] %vm285, %v1617
  %v1620 = vsel %vm1608, 1, 0
  %1621 = vset.pattern.permute.xlu0 0
  %1622 = vperm.xlu0 %1621, %v1620
  %v1623 = vpop.permute.xlu0 %1622
  %vm1624 = vcmp.eq.s32.totalorder %v1623, 1
  %v1625 = vsel %vm1624, %v1604, 0.0
  %1627 = vrot.lane.b32.xlu0 %v1625, 96
  %v1628 = vpop.permute.xlu0 %1627
  %1630 = vst.msk [vmem:[%s8] sm:$0xff] %vm444, %v1628
  %v1631 = vsel %vm1613, %v1536, %v1464
  %v1632 = vsel %vm1613, %v1530, %v1465
  %v1633 = vsel %vm1624, %v1604, %v1466
  %v1634 = vsel %vm1624, %v1598, %v1467
  %1636 = vrot.lane.b32.xlu0 %v1631, 80
  %v1637 = vpop.permute.xlu0 %1636
  %1639 = vst.msk [vmem:[%s9] sm:$0xff] %vm285, %v1637
  %1641 = vrot.lane.b32.xlu0 %v1633, 96
  %v1642 = vpop.permute.xlu0 %1641
  %1644 = vst.msk [vmem:[%s9] sm:$0xff] %vm444, %v1642
  %1646 = vrot.lane.b32.xlu0 %v1632, 112
  %v1647 = vpop.permute.xlu0 %1646
  %1649 = vst.msk [vmem:[%s10] sm:$0xff] %vm285, %v1647
  %1650 = vst.msk [vmem:[%s10] sm:$0xff] %vm444, %v1634
  // Predicated region
  $region34: #{encoder_forward.1} parent=0 // pred_check
    _
  $region35: #{encoder_forward.1} parent=0 // pred_check_branch
    %1652 = sbr.rel (0) target = $region37
  $region36: #{encoder_forward.1} parent=0 // pred_region
    _
  $region37: #{encoder_forward.1} parent=0 // pred_fallthru
    _
  // Predicated region
  $region38: #{encoder_forward.1} parent=0 // pred_check
    _
  $region39: #{encoder_forward.1} parent=0 // pred_check_branch
    %1654 = sbr.rel (0) target = $region41
  $region40: #{encoder_forward.1} parent=0 // pred_region
    _
  $region41: #{encoder_forward.1} parent=0 // pred_fallthru
    _
  // Predicated region
  $region42: #{encoder_forward.1} parent=0 // pred_check
    _
  $region43: #{encoder_forward.1} parent=0 // pred_check_branch
    %1656 = sbr.rel (0) target = $region45
  $region44: #{encoder_forward.1} parent=0 // pred_region
    _
  $region45: #{encoder_forward.1} parent=0 // pred_fallthru
    _
  // Predicated region
  $region46: #{encoder_forward.1} parent=0 // pred_check
    _
  $region47: #{encoder_forward.1} parent=0 // pred_check_branch
    %1658 = sbr.rel (0) target = $region49
  $region48: #{encoder_forward.1} parent=0 // pred_region
    _
  $region49: #{encoder_forward.1} parent=0 // pred_fallthru
    _
  // Predicated region
  $region50: #{encoder_forward.1} parent=0 // pred_check
    _
  $region51: #{encoder_forward.1} parent=0 // pred_check_branch
    %1660 = sbr.rel (0) target = $region53
  $region52: #{encoder_forward.1} parent=0 // pred_region
    _
  $region53: #{encoder_forward.1} parent=0 // pred_fallthru
    _
  // Predicated region
  $region54: #{encoder_forward.1} parent=0 // pred_check
    _
  $region55: #{encoder_forward.1} parent=0 // pred_check_branch
    %1662 = sbr.rel (0) target = $region57
  $region56: #{encoder_forward.1} parent=0 // pred_region
    _
  $region57: #{encoder_forward.1} parent=0 // pred_fallthru
    _

</llo_original>
